<compile_context>
chip_gen: v7x
topology: tpu7x:2x2x1
jax: 0.10.0
libtpu: 0.0.40
codegen_flags: <defaults>
</compile_context>

<pallas_src>
import jax
import jax.numpy as jnp
from jax.experimental import pallas as pl
from jax.experimental.pallas import tpu as pltpu

# ----------------------------- configuration --------------------------------
B = 2
C_IMG, H_IMG, W_IMG = 4, 16, 16
IMG_FLAT = C_IMG * H_IMG * W_IMG          # 1024
CNN_OUT = 512                              # image-encoder output dim
VOCAB = 85                                 # one-hot text vocab
VOCAB_PAD = 128                            # vocab padded to one lane tile
TEXT_ENC_OUT = 512                         # text_fc output dim (hardcoded)
D = 128                                    # common_dim (small-shape choice)
NUM_HEADS = 4                              # irrelevant for seq_len == 1
NUM_CLASSES = 8
LN_EPS = 1e-5
BN_EPS = 1e-5
ACT_W = IMG_FLAT + VOCAB_PAD               # 1152 merged activation lanes

# ---- row offsets inside the 128-lane weight slab (w1) ------------------------
OFF_IMG = 0                                # 1024: image encoder @ image_projector
OFF_T3P = OFF_IMG + IMG_FLAT               # 512 : text_fc[4] @ text_projector
OFF_F1  = OFF_T3P + TEXT_ENC_OUT           # 256 : fc_fusion[0] (BN1 folded)
OFF_F23 = OFF_F1 + 2 * D                   # 128 : fc_fusion[4] (BN2) + fc_fusion[8]
W1_ROWS = OFF_F23 + D                      # 1920

# ---- row offsets inside the 256-lane weight slab (w2) ------------------------
OFF_T1   = 0                               # 128 : text_fc[0] (vocab padded)
OFF_T2A  = OFF_T1 + VOCAB_PAD              # 256 : text_fc[2], out cols 0:256
OFF_T2B  = OFF_T2A + 256                   # 256 : text_fc[2], out cols 256:512
OFF_SA   = OFF_T2B + 256                   # 128 : [img | txt] self-attn (Wv@Wout)
OFF_RES  = OFF_SA + D                      # 128 : [img | txt] residual (I + Wv@Wout)
OFF_GATE = OFF_RES + D                     # 128 : [img_gate | txt_gate]
W2_ROWS  = OFF_GATE + D                    # 1024

# ---- row indices inside the (16, 128) f32 bias/LN slab -----------------------
(BR_IMG, BR_T3P, BR_SA_I, BR_SA_T,
 BR_RES_I, BR_LN_GI, BR_LN_BI,
 BR_RES_T, BR_LN_GT, BR_LN_BT,
 BR_GATE_I, BR_GATE_T, BR_F1, BR_F2, BR_F3) = range(15)
B1_ROWS = 16

# ---- row indices inside the (8, 256) f32 text-MLP bias slab ------------------
BT_T1, BT_T2A, BT_T2B = 0, 1, 2
B2_ROWS = 8


# ------------------------------- kernel --------------------------------------
def multimodal_kernel(act_ref, w1_ref, w2_ref, b128_ref, b256_ref, out_ref):
    RT = act_ref.shape[0]                                  # rows per grid tile
    bf16 = jnp.bfloat16

    def dot(x, w):
        return jnp.dot(x, w, preferred_element_type=jnp.float32)

    def bias128(r):
        return b128_ref[r:r + 1, :]                        # (1, 128) f32

    def bias256(r):
        return b256_ref[r:r + 1, :]                        # (1, 256) f32

    def layer_norm(x, g_row, beta_row):                    # one-pass LN
        mu = jnp.mean(x, axis=-1, keepdims=True)
        var = jnp.maximum(jnp.mean(x * x, axis=-1, keepdims=True) - mu * mu, 0.0)
        return (x - mu) * jax.lax.rsqrt(var + LN_EPS) * bias128(g_row) + bias128(beta_row)

    def pair(x_img, x_txt, off):
        """Fuse the per-branch (RT,128)@(128,128) pair into one
        (2*RT,128)@(128,256) MXU push; slice the two wanted quadrants."""
        z = jnp.concatenate([x_img.astype(bf16), x_txt.astype(bf16)], axis=0)
        r = dot(z, w2_ref[off:off + D, :])                 # (2*RT, 256) f32
        return r[:RT, 0:D], r[RT:, D:2 * D]

    img = act_ref[:, 0:IMG_FLAT]                           # (RT, 1024) bf16
    txt = act_ref[:, IMG_FLAT:ACT_W]                       # (RT, 128)  bf16 one-hot

    # ---- image branch (encoder + projector folded into one matmul) ---------
    proj_img = dot(img, w1_ref[OFF_IMG:OFF_IMG + IMG_FLAT, :]) + bias128(BR_IMG)

    # ---- text branch: Linear/ReLU/Linear/ReLU then folded (t3 @ projector) --
    h1 = jnp.maximum(dot(txt, w2_ref[OFF_T1:OFF_T1 + VOCAB_PAD, :])
                     + bias256(BT_T1), 0.0).astype(bf16)               # (RT, 256)
    h2a = jnp.maximum(dot(h1, w2_ref[OFF_T2A:OFF_T2A + 256, :])
                      + bias256(BT_T2A), 0.0).astype(bf16)             # (RT, 256)
    h2b = jnp.maximum(dot(h1, w2_ref[OFF_T2B:OFF_T2B + 256, :])
                      + bias256(BT_T2B), 0.0).astype(bf16)             # (RT, 256)
    proj_txt = (dot(h2a, w1_ref[OFF_T3P:OFF_T3P + 256, :])
                + dot(h2b, w1_ref[OFF_T3P + 256:OFF_T3P + 512, :])
                + bias128(BR_T3P))

    # ---- self attention, seq_len==1 (softmax over one key == 1, exact) -----
    sa_i, sa_t = pair(proj_img, proj_txt, OFF_SA)
    sa_i = sa_i + bias128(BR_SA_I)
    sa_t = sa_t + bias128(BR_SA_T)

    # ---- residual blocks: x @ (I + Wv@Wout) + b, then LayerNorm -------------
    r_i, r_t = pair(sa_i, sa_t, OFF_RES)
    res_i = layer_norm(r_i + bias128(BR_RES_I), BR_LN_GI, BR_LN_BI)
    res_t = layer_norm(r_t + bias128(BR_RES_T), BR_LN_GT, BR_LN_BT)

    # mean over sequence dim of length 1 == identity (pooled == residual out)

    # ---- gfcam gating --------------------------------------------------------
    g_i, g_t = pair(res_i, res_t, OFF_GATE)
    a_i = jax.nn.sigmoid(g_i + bias128(BR_GATE_I))
    a_t = jax.nn.sigmoid(g_t + bias128(BR_GATE_T))
    gated = jnp.concatenate([(a_i * res_i).astype(bf16),
                             (a_t * res_t).astype(bf16)], axis=1)      # (RT, 256)

    # ---- fc_fusion (BN folded; dropout = id). F2 and F3 share one slab: ------
    #   cols 0:64 = BN-folded fc_fusion[4]; rows 0:64, cols 64:72 = fc_fusion[8];
    #   x2's garbage lanes 64:128 are annihilated by the slab's zero rows 64:128.
    x1 = jnp.maximum(dot(gated, w1_ref[OFF_F1:OFF_F1 + 2 * D, :])
                     + bias128(BR_F1), 0.0).astype(bf16)
    f23 = w1_ref[OFF_F23:OFF_F23 + D, :]
    x2 = jnp.maximum(dot(x1, f23) + bias128(BR_F2), 0.0).astype(bf16)
    out_ref[...] = dot(x2, f23) + bias128(BR_F3)   # logits at lanes 64:64+NUM_CLASSES


# --------------------------- init + fold + pack -------------------------------
def _linear(key, fan_in, fan_out):
    """PyTorch-style uniform(-1/sqrt(fan_in), 1/sqrt(fan_in)); W stored (in, out)."""
    kw, kb = jax.random.split(key)
    bound = 1.0 / jnp.sqrt(jnp.asarray(fan_in, jnp.float32))
    w = jax.random.uniform(kw, (fan_in, fan_out), jnp.float32, -bound, bound)
    b = jax.random.uniform(kb, (1, fan_out), jnp.float32, -bound, bound)
    return w, b


def _mha(key, dim):
    kin, kout = jax.random.split(key)
    w_in, b_in = _linear(kin, dim, 3 * dim)
    w_out, b_out = _linear(kout, dim, dim)
    return w_in, b_in, w_out, b_out


def _fold_mha(w_in, b_in, w_out, b_out, dim, add_identity=False):
    """seq_len==1 MHA == value-projection @ out-projection (exact)."""
    wv = w_in[:, 2 * dim:]
    bv = b_in[:, 2 * dim:]
    w = wv @ w_out
    if add_identity:
        w = w + jnp.eye(dim, dtype=jnp.float32)
    b = bv @ w_out + b_out
    return w, b


def init_packed_params(seed=0):
    key = jax.random.PRNGKey(seed)
    ks = iter(jax.random.split(key, 16))

    # raw module parameters
    w_enc, b_enc = _linear(next(ks), IMG_FLAT, CNN_OUT)       # stand-in image encoder
    w_ip, b_ip = _linear(next(ks), CNN_OUT, D)                # image_projector
    w_t1, b_t1 = _linear(next(ks), VOCAB, 256)                # text_fc[0]
    w_t2, b_t2 = _linear(next(ks), 256, 512)                  # text_fc[2]
    w_t3, b_t3 = _linear(next(ks), 512, TEXT_ENC_OUT)         # text_fc[4]
    w_tp, b_tp = _linear(next(ks), TEXT_ENC_OUT, D)           # text_projector
    sa_i = _mha(next(ks), D)                                  # image_self_attention
    sa_t = _mha(next(ks), D)                                  # text_self_attention
    res_i = _mha(next(ks), D)                                 # image_residual cross-attn
    res_t = _mha(next(ks), D)                                 # text_residual cross-attn
    ln_gi, ln_bi = jnp.ones((1, D), jnp.float32), jnp.zeros((1, D), jnp.float32)
    ln_gt, ln_bt = jnp.ones((1, D), jnp.float32), jnp.zeros((1, D), jnp.float32)
    w_ig, b_ig = _linear(next(ks), D, D)                      # img_gate
    w_tg, b_tg = _linear(next(ks), D, D)                      # txt_gate
    w_f1, b_f1 = _linear(next(ks), 2 * D, D)                  # fc_fusion[0]
    w_f2, b_f2 = _linear(next(ks), D, D // 2)                 # fc_fusion[4]
    w_f3, b_f3 = _linear(next(ks), D // 2, NUM_CLASSES)       # fc_fusion[8]

    # ---- algebraic folds (done once, in f32) --------------------------------
    W_img, B_img = w_enc @ w_ip, b_enc @ w_ip + b_ip
    W_t3p, B_t3p = w_t3 @ w_tp, b_t3 @ w_tp + b_tp
    W_sai, B_sai = _fold_mha(*sa_i, D)
    W_sat, B_sat = _fold_mha(*sa_t, D)
    W_ri, B_ri = _fold_mha(*res_i, D, add_identity=True)
    W_rt, B_rt = _fold_mha(*res_t, D, add_identity=True)

    # BatchNorm (eval: running mean=0, var=1, gamma=1, beta=0) folded into Linear
    s = 1.0 / jnp.sqrt(1.0 + BN_EPS)
    W_f1, B_f1 = w_f1 * s, b_f1 * s
    W_f2, B_f2 = w_f2 * s, b_f2 * s

    # combined fc_fusion[4]/[8] slab (no zero rows DMA'd for F3)
    f23 = jnp.zeros((D, D), jnp.float32)
    f23 = f23.at[:, :D // 2].set(W_f2)
    f23 = f23.at[:D // 2, D // 2:D // 2 + NUM_CLASSES].set(w_f3)

    # ---- pack: 128-lane slab -------------------------------------------------
    w1 = jnp.concatenate([W_img, W_t3p, W_f1, f23], axis=0).astype(jnp.bfloat16)
    assert w1.shape == (W1_ROWS, D)

    # ---- pack: 256-lane slab (text MLP repacked at 256 lanes; branch pairs) --
    wt1 = jnp.zeros((VOCAB_PAD, 256), jnp.float32).at[:VOCAB, :].set(w_t1)
    w2 = jnp.concatenate([
        wt1,
        w_t2[:, :256], w_t2[:, 256:],
        jnp.concatenate([W_sai, W_sat], axis=1),
        jnp.concatenate([W_ri, W_rt], axis=1),
        jnp.concatenate([w_ig, w_tg], axis=1),
    ], axis=0).astype(jnp.bfloat16)
    assert w2.shape == (W2_ROWS, 2 * D)

    # ---- pack: 128-wide biases / LN params, f32 ------------------------------
    b_f2_row = jnp.zeros((1, D), jnp.float32).at[:, :D // 2].set(B_f2)
    b_f3_row = jnp.zeros((1, D), jnp.float32).at[:, D // 2:D // 2 + NUM_CLASSES].set(b_f3)
    rows = jnp.concatenate([B_img, B_t3p, B_sai, B_sat, B_ri, ln_gi, ln_bi,
                            B_rt, ln_gt, ln_bt, b_ig, b_tg, B_f1, b_f2_row, b_f3_row],
                           axis=0)
    b128 = jnp.zeros((B1_ROWS, D), jnp.float32).at[:rows.shape[0], :].set(rows)

    # ---- pack: 256-wide biases for the text MLP, f32 --------------------------
    b256 = jnp.zeros((B2_ROWS, 2 * D), jnp.float32)
    b256 = b256.at[BT_T1, :].set(b_t1[0])
    b256 = b256.at[BT_T2A, :].set(b_t2[0, :256])
    b256 = b256.at[BT_T2B, :].set(b_t2[0, 256:])

    return w1, w2, b128, b256


# --------------------------------- wrapper ------------------------------------
@jax.jit
def multimodal_forward(image_nchw, text_onehot, packed):
    w1, w2, b128, b256 = packed
    n = image_nchw.shape[0]
    # small batches: one 16-row tile; large batches: 128-row tiles split across
    # grid steps (and across both TensorCores on v7x via "parallel").
    row_tile = 16 if n <= 64 else 128
    pb = ((n + row_tile - 1) // row_tile) * row_tile
    grid = (pb // row_tile,)

    # merged bf16 activation slab: [flattened image | padded one-hot text]
    act = jnp.zeros((pb, ACT_W), jnp.bfloat16)
    act = act.at[:n, :IMG_FLAT].set(image_nchw.reshape(n, IMG_FLAT).astype(jnp.bfloat16))
    act = act.at[:n, IMG_FLAT:IMG_FLAT + VOCAB].set(text_onehot.astype(jnp.bfloat16))

    out = pl.pallas_call(
        multimodal_kernel,
        out_shape=jax.ShapeDtypeStruct((pb, D), jnp.float32),
        grid=grid,
        in_specs=[
            pl.BlockSpec((row_tile, ACT_W), lambda i: (i, 0)),
            pl.BlockSpec((W1_ROWS, D), lambda i: (0, 0)),        # resident weights
            pl.BlockSpec((W2_ROWS, 2 * D), lambda i: (0, 0)),
            pl.BlockSpec((B1_ROWS, D), lambda i: (0, 0)),
            pl.BlockSpec((B2_ROWS, 2 * D), lambda i: (0, 0)),
        ],
        out_specs=pl.BlockSpec((row_tile, D), lambda i: (i, 0)),
        compiler_params=pltpu.CompilerParams(
            dimension_semantics=("parallel",),
            vmem_limit_bytes=16 * 1024 * 1024),
    )(act, w1, w2, b128, b256)
    # logits live in lanes [64, 64+NUM_CLASSES) of the lane-dense output
    return out[:n, D // 2:D // 2 + NUM_CLASSES]


# ----------------------------------- main --------------------------------------
if __name__ == "__main__":
    key = jax.random.PRNGKey(0)
    k_img, k_txt = jax.random.split(key)
    image = jax.random.normal(k_img, (B, C_IMG, H_IMG, W_IMG), jnp.float32)
    # one-hot-ish text metadata (B, VOCAB)
    text = (jax.random.uniform(k_txt, (B, VOCAB), jnp.float32) > 0.9).astype(jnp.float32)

    packed = init_packed_params(seed=0)

    out = multimodal_forward(image, text, packed)
    jax.block_until_ready(out)
    assert out.shape == (B, NUM_CLASSES) and out.dtype == jnp.float32
    assert bool(jnp.all(jnp.isfinite(out)))
    print("KERNEL_OK")
</pallas_src>

<mosaic_0001>
module attributes {stable_mosaic.version = 11 : i64} {
  func.func @multimodal_kernel(%arg0: i32, %arg1: memref<16x1152xbf16, #tpu.memory_space<vmem>>, %arg2: memref<1920x128xbf16, #tpu.memory_space<vmem>>, %arg3: memref<1024x256xbf16, #tpu.memory_space<vmem>>, %arg4: memref<16x128xf32, #tpu.memory_space<vmem>>, %arg5: memref<8x256xf32, #tpu.memory_space<vmem>>, %arg6: memref<16x128xf32, #tpu.memory_space<vmem>>) attributes {dimension_semantics = [#tpu.dimension_semantics<parallel>], iteration_bounds = array<i64: 1>, scalar_prefetch = 0 : i64, scratch_operands = 0 : i64, tpu.core_type = #tpu.core_type<tc>, window_params = [{transform_indices = @transform_0, window_bounds = array<i64: 16, 1152>}, {pipeline_mode = #tpu.pipeline_mode<synchronous>, transform_indices = @transform_1, window_bounds = array<i64: 1920, 128>}, {pipeline_mode = #tpu.pipeline_mode<synchronous>, transform_indices = @transform_2, window_bounds = array<i64: 1024, 256>}, {pipeline_mode = #tpu.pipeline_mode<synchronous>, transform_indices = @transform_3, window_bounds = array<i64: 16, 128>}, {pipeline_mode = #tpu.pipeline_mode<synchronous>, transform_indices = @transform_4, window_bounds = array<i64: 8, 256>}, {transform_indices = @transform_5, window_bounds = array<i64: 16, 128>}]} {
    %c0 = arith.constant 0 : index
    %c0_0 = arith.constant 0 : index
    %0 = vector.load %arg1[%c0, %c0_0] : memref<16x1152xbf16, #tpu.memory_space<vmem>>, vector<16x1024xbf16>
    %c0_1 = arith.constant 0 : index
    %c1024 = arith.constant 1024 : index
    %1 = vector.load %arg1[%c0_1, %c1024] : memref<16x1152xbf16, #tpu.memory_space<vmem>>, vector<16x128xbf16>
    %c0_2 = arith.constant 0 : index
    %c0_3 = arith.constant 0 : index
    %2 = vector.load %arg2[%c0_2, %c0_3] : memref<1920x128xbf16, #tpu.memory_space<vmem>>, vector<1024x128xbf16>
    %cst = arith.constant dense<0.000000e+00> : vector<16x128xf32>
    %3 = tpu.matmul %0, %2, %cst {dimension_numbers = #tpu.dot_dimension_numbers<[1], [0], [0], [1], [0, 0, 1, 1], [], []>} : vector<16x1024xbf16>, vector<1024x128xbf16>, vector<16x128xf32> -> vector<16x128xf32>
    %c0_4 = arith.constant 0 : index
    %c0_5 = arith.constant 0 : index
    %4 = vector.load %arg4[%c0_4, %c0_5] : memref<16x128xf32, #tpu.memory_space<vmem>>, vector<1x128xf32>
    %5 = vector.broadcast %4 : vector<1x128xf32> to vector<16x128xf32>
    %6 = arith.addf %3, %5 : vector<16x128xf32>
    %c0_6 = arith.constant 0 : index
    %c0_7 = arith.constant 0 : index
    %7 = vector.load %arg3[%c0_6, %c0_7] : memref<1024x256xbf16, #tpu.memory_space<vmem>>, vector<128x256xbf16>
    %cst_8 = arith.constant dense<0.000000e+00> : vector<16x256xf32>
    %8 = tpu.matmul %1, %7, %cst_8 {dimension_numbers = #tpu.dot_dimension_numbers<[1], [0], [0], [1], [0, 0, 1, 1], [], []>} : vector<16x128xbf16>, vector<128x256xbf16>, vector<16x256xf32> -> vector<16x256xf32>
    %c0_9 = arith.constant 0 : index
    %c0_10 = arith.constant 0 : index
    %9 = vector.load %arg5[%c0_9, %c0_10] : memref<8x256xf32, #tpu.memory_space<vmem>>, vector<1x256xf32>
    %10 = vector.broadcast %9 : vector<1x256xf32> to vector<16x256xf32>
    %11 = arith.addf %8, %10 : vector<16x256xf32>
    %cst_11 = arith.constant 0.000000e+00 : f32
    %12 = vector.broadcast %cst_11 : f32 to vector<16x256xf32>
    %13 = arith.maximumf %11, %12 : vector<16x256xf32>
    %14 = arith.truncf %13 : vector<16x256xf32> to vector<16x256xbf16>
    %c128 = arith.constant 128 : index
    %c0_12 = arith.constant 0 : index
    %15 = vector.load %arg3[%c128, %c0_12] : memref<1024x256xbf16, #tpu.memory_space<vmem>>, vector<256x256xbf16>
    %cst_13 = arith.constant dense<0.000000e+00> : vector<16x256xf32>
    %16 = tpu.matmul %14, %15, %cst_13 {dimension_numbers = #tpu.dot_dimension_numbers<[1], [0], [0], [1], [0, 0, 1, 1], [], []>} : vector<16x256xbf16>, vector<256x256xbf16>, vector<16x256xf32> -> vector<16x256xf32>
    %c1 = arith.constant 1 : index
    %c0_14 = arith.constant 0 : index
    %17 = vector.load %arg5[%c1, %c0_14] : memref<8x256xf32, #tpu.memory_space<vmem>>, vector<1x256xf32>
    %18 = vector.broadcast %17 : vector<1x256xf32> to vector<16x256xf32>
    %19 = arith.addf %16, %18 : vector<16x256xf32>
    %cst_15 = arith.constant 0.000000e+00 : f32
    %20 = vector.broadcast %cst_15 : f32 to vector<16x256xf32>
    %21 = arith.maximumf %19, %20 : vector<16x256xf32>
    %22 = arith.truncf %21 : vector<16x256xf32> to vector<16x256xbf16>
    %c384 = arith.constant 384 : index
    %c0_16 = arith.constant 0 : index
    %23 = vector.load %arg3[%c384, %c0_16] : memref<1024x256xbf16, #tpu.memory_space<vmem>>, vector<256x256xbf16>
    %cst_17 = arith.constant dense<0.000000e+00> : vector<16x256xf32>
    %24 = tpu.matmul %14, %23, %cst_17 {dimension_numbers = #tpu.dot_dimension_numbers<[1], [0], [0], [1], [0, 0, 1, 1], [], []>} : vector<16x256xbf16>, vector<256x256xbf16>, vector<16x256xf32> -> vector<16x256xf32>
    %c2 = arith.constant 2 : index
    %c0_18 = arith.constant 0 : index
    %25 = vector.load %arg5[%c2, %c0_18] : memref<8x256xf32, #tpu.memory_space<vmem>>, vector<1x256xf32>
    %26 = vector.broadcast %25 : vector<1x256xf32> to vector<16x256xf32>
    %27 = arith.addf %24, %26 : vector<16x256xf32>
    %cst_19 = arith.constant 0.000000e+00 : f32
    %28 = vector.broadcast %cst_19 : f32 to vector<16x256xf32>
    %29 = arith.maximumf %27, %28 : vector<16x256xf32>
    %30 = arith.truncf %29 : vector<16x256xf32> to vector<16x256xbf16>
    %c1024_20 = arith.constant 1024 : index
    %c0_21 = arith.constant 0 : index
    %31 = vector.load %arg2[%c1024_20, %c0_21] : memref<1920x128xbf16, #tpu.memory_space<vmem>>, vector<256x128xbf16>
    %cst_22 = arith.constant dense<0.000000e+00> : vector<16x128xf32>
    %32 = tpu.matmul %22, %31, %cst_22 {dimension_numbers = #tpu.dot_dimension_numbers<[1], [0], [0], [1], [0, 0, 1, 1], [], []>} : vector<16x256xbf16>, vector<256x128xbf16>, vector<16x128xf32> -> vector<16x128xf32>
    %c1280 = arith.constant 1280 : index
    %c0_23 = arith.constant 0 : index
    %33 = vector.load %arg2[%c1280, %c0_23] : memref<1920x128xbf16, #tpu.memory_space<vmem>>, vector<256x128xbf16>
    %cst_24 = arith.constant dense<0.000000e+00> : vector<16x128xf32>
    %34 = tpu.matmul %30, %33, %cst_24 {dimension_numbers = #tpu.dot_dimension_numbers<[1], [0], [0], [1], [0, 0, 1, 1], [], []>} : vector<16x256xbf16>, vector<256x128xbf16>, vector<16x128xf32> -> vector<16x128xf32>
    %35 = arith.addf %32, %34 : vector<16x128xf32>
    %c1_25 = arith.constant 1 : index
    %c0_26 = arith.constant 0 : index
    %36 = vector.load %arg4[%c1_25, %c0_26] : memref<16x128xf32, #tpu.memory_space<vmem>>, vector<1x128xf32>
    %37 = vector.broadcast %36 : vector<1x128xf32> to vector<16x128xf32>
    %38 = arith.addf %35, %37 : vector<16x128xf32>
    %39 = arith.truncf %6 : vector<16x128xf32> to vector<16x128xbf16>
    %40 = arith.truncf %38 : vector<16x128xf32> to vector<16x128xbf16>
    %41 = tpu.concatenate %39, %40 in 0 : vector<16x128xbf16>, vector<16x128xbf16> -> vector<32x128xbf16>
    %c640 = arith.constant 640 : index
    %c0_27 = arith.constant 0 : index
    %42 = vector.load %arg3[%c640, %c0_27] : memref<1024x256xbf16, #tpu.memory_space<vmem>>, vector<128x256xbf16>
    %cst_28 = arith.constant dense<0.000000e+00> : vector<32x256xf32>
    %43 = tpu.matmul %41, %42, %cst_28 {dimension_numbers = #tpu.dot_dimension_numbers<[1], [0], [0], [1], [0, 0, 1, 1], [], []>} : vector<32x128xbf16>, vector<128x256xbf16>, vector<32x256xf32> -> vector<32x256xf32>
    %44 = vector.extract_strided_slice %43 {offsets = [0, 0], sizes = [16, 128], strides = [1, 1]} : vector<32x256xf32> to vector<16x128xf32>
    %45 = vector.extract_strided_slice %43 {offsets = [16, 128], sizes = [16, 128], strides = [1, 1]} : vector<32x256xf32> to vector<16x128xf32>
    %c2_29 = arith.constant 2 : index
    %c0_30 = arith.constant 0 : index
    %46 = vector.load %arg4[%c2_29, %c0_30] : memref<16x128xf32, #tpu.memory_space<vmem>>, vector<1x128xf32>
    %47 = vector.broadcast %46 : vector<1x128xf32> to vector<16x128xf32>
    %48 = arith.addf %44, %47 : vector<16x128xf32>
    %c3 = arith.constant 3 : index
    %c0_31 = arith.constant 0 : index
    %49 = vector.load %arg4[%c3, %c0_31] : memref<16x128xf32, #tpu.memory_space<vmem>>, vector<1x128xf32>
    %50 = vector.broadcast %49 : vector<1x128xf32> to vector<16x128xf32>
    %51 = arith.addf %45, %50 : vector<16x128xf32>
    %52 = arith.truncf %48 : vector<16x128xf32> to vector<16x128xbf16>
    %53 = arith.truncf %51 : vector<16x128xf32> to vector<16x128xbf16>
    %54 = tpu.concatenate %52, %53 in 0 : vector<16x128xbf16>, vector<16x128xbf16> -> vector<32x128xbf16>
    %c768 = arith.constant 768 : index
    %c0_32 = arith.constant 0 : index
    %55 = vector.load %arg3[%c768, %c0_32] : memref<1024x256xbf16, #tpu.memory_space<vmem>>, vector<128x256xbf16>
    %cst_33 = arith.constant dense<0.000000e+00> : vector<32x256xf32>
    %56 = tpu.matmul %54, %55, %cst_33 {dimension_numbers = #tpu.dot_dimension_numbers<[1], [0], [0], [1], [0, 0, 1, 1], [], []>} : vector<32x128xbf16>, vector<128x256xbf16>, vector<32x256xf32> -> vector<32x256xf32>
    %57 = vector.extract_strided_slice %56 {offsets = [0, 0], sizes = [16, 128], strides = [1, 1]} : vector<32x256xf32> to vector<16x128xf32>
    %58 = vector.extract_strided_slice %56 {offsets = [16, 128], sizes = [16, 128], strides = [1, 1]} : vector<32x256xf32> to vector<16x128xf32>
    %c4 = arith.constant 4 : index
    %c0_34 = arith.constant 0 : index
    %59 = vector.load %arg4[%c4, %c0_34] : memref<16x128xf32, #tpu.memory_space<vmem>>, vector<1x128xf32>
    %60 = vector.broadcast %59 : vector<1x128xf32> to vector<16x128xf32>
    %61 = arith.addf %57, %60 : vector<16x128xf32>
    %cst_35 = arith.constant dense<0.000000e+00> : vector<16xf32>
    %62 = vector.multi_reduction <add>, %61, %cst_35 [1] : vector<16x128xf32> to vector<16xf32>
    %63 = vector.shape_cast %62 : vector<16xf32> to vector<16x1xf32>
    %cst_36 = arith.constant 1.280000e+02 : f32
    %64 = vector.broadcast %cst_36 : f32 to vector<16x1xf32>
    %65 = arith.divf %63, %64 : vector<16x1xf32>
    %66 = arith.mulf %61, %61 : vector<16x128xf32>
    %cst_37 = arith.constant dense<0.000000e+00> : vector<16xf32>
    %67 = vector.multi_reduction <add>, %66, %cst_37 [1] : vector<16x128xf32> to vector<16xf32>
    %68 = vector.shape_cast %67 : vector<16xf32> to vector<16x1xf32>
    %cst_38 = arith.constant 1.280000e+02 : f32
    %69 = vector.broadcast %cst_38 : f32 to vector<16x1xf32>
    %70 = arith.divf %68, %69 : vector<16x1xf32>
    %71 = arith.mulf %65, %65 : vector<16x1xf32>
    %72 = arith.subf %70, %71 : vector<16x1xf32>
    %cst_39 = arith.constant 0.000000e+00 : f32
    %73 = vector.broadcast %cst_39 : f32 to vector<16x1xf32>
    %74 = arith.maximumf %72, %73 : vector<16x1xf32>
    %75 = vector.broadcast %65 : vector<16x1xf32> to vector<16x128xf32>
    %76 = arith.subf %61, %75 : vector<16x128xf32>
    %cst_40 = arith.constant 9.99999974E-6 : f32
    %77 = vector.broadcast %cst_40 : f32 to vector<16x1xf32>
    %78 = arith.addf %74, %77 : vector<16x1xf32>
    %79 = math.rsqrt %78 : vector<16x1xf32>
    %80 = vector.broadcast %79 : vector<16x1xf32> to vector<16x128xf32>
    %81 = arith.mulf %76, %80 : vector<16x128xf32>
    %c5 = arith.constant 5 : index
    %c0_41 = arith.constant 0 : index
    %82 = vector.load %arg4[%c5, %c0_41] : memref<16x128xf32, #tpu.memory_space<vmem>>, vector<1x128xf32>
    %83 = vector.broadcast %82 : vector<1x128xf32> to vector<16x128xf32>
    %84 = arith.mulf %81, %83 : vector<16x128xf32>
    %c6 = arith.constant 6 : index
    %c0_42 = arith.constant 0 : index
    %85 = vector.load %arg4[%c6, %c0_42] : memref<16x128xf32, #tpu.memory_space<vmem>>, vector<1x128xf32>
    %86 = vector.broadcast %85 : vector<1x128xf32> to vector<16x128xf32>
    %87 = arith.addf %84, %86 : vector<16x128xf32>
    %c7 = arith.constant 7 : index
    %c0_43 = arith.constant 0 : index
    %88 = vector.load %arg4[%c7, %c0_43] : memref<16x128xf32, #tpu.memory_space<vmem>>, vector<1x128xf32>
    %89 = vector.broadcast %88 : vector<1x128xf32> to vector<16x128xf32>
    %90 = arith.addf %58, %89 : vector<16x128xf32>
    %cst_44 = arith.constant dense<0.000000e+00> : vector<16xf32>
    %91 = vector.multi_reduction <add>, %90, %cst_44 [1] : vector<16x128xf32> to vector<16xf32>
    %92 = vector.shape_cast %91 : vector<16xf32> to vector<16x1xf32>
    %cst_45 = arith.constant 1.280000e+02 : f32
    %93 = vector.broadcast %cst_45 : f32 to vector<16x1xf32>
    %94 = arith.divf %92, %93 : vector<16x1xf32>
    %95 = arith.mulf %90, %90 : vector<16x128xf32>
    %cst_46 = arith.constant dense<0.000000e+00> : vector<16xf32>
    %96 = vector.multi_reduction <add>, %95, %cst_46 [1] : vector<16x128xf32> to vector<16xf32>
    %97 = vector.shape_cast %96 : vector<16xf32> to vector<16x1xf32>
    %cst_47 = arith.constant 1.280000e+02 : f32
    %98 = vector.broadcast %cst_47 : f32 to vector<16x1xf32>
    %99 = arith.divf %97, %98 : vector<16x1xf32>
    %100 = arith.mulf %94, %94 : vector<16x1xf32>
    %101 = arith.subf %99, %100 : vector<16x1xf32>
    %cst_48 = arith.constant 0.000000e+00 : f32
    %102 = vector.broadcast %cst_48 : f32 to vector<16x1xf32>
    %103 = arith.maximumf %101, %102 : vector<16x1xf32>
    %104 = vector.broadcast %94 : vector<16x1xf32> to vector<16x128xf32>
    %105 = arith.subf %90, %104 : vector<16x128xf32>
    %cst_49 = arith.constant 9.99999974E-6 : f32
    %106 = vector.broadcast %cst_49 : f32 to vector<16x1xf32>
    %107 = arith.addf %103, %106 : vector<16x1xf32>
    %108 = math.rsqrt %107 : vector<16x1xf32>
    %109 = vector.broadcast %108 : vector<16x1xf32> to vector<16x128xf32>
    %110 = arith.mulf %105, %109 : vector<16x128xf32>
    %c8 = arith.constant 8 : index
    %c0_50 = arith.constant 0 : index
    %111 = vector.load %arg4[%c8, %c0_50] : memref<16x128xf32, #tpu.memory_space<vmem>>, vector<1x128xf32>
    %112 = vector.broadcast %111 : vector<1x128xf32> to vector<16x128xf32>
    %113 = arith.mulf %110, %112 : vector<16x128xf32>
    %c9 = arith.constant 9 : index
    %c0_51 = arith.constant 0 : index
    %114 = vector.load %arg4[%c9, %c0_51] : memref<16x128xf32, #tpu.memory_space<vmem>>, vector<1x128xf32>
    %115 = vector.broadcast %114 : vector<1x128xf32> to vector<16x128xf32>
    %116 = arith.addf %113, %115 : vector<16x128xf32>
    %117 = arith.truncf %87 : vector<16x128xf32> to vector<16x128xbf16>
    %118 = arith.truncf %116 : vector<16x128xf32> to vector<16x128xbf16>
    %119 = tpu.concatenate %117, %118 in 0 : vector<16x128xbf16>, vector<16x128xbf16> -> vector<32x128xbf16>
    %c896 = arith.constant 896 : index
    %c0_52 = arith.constant 0 : index
    %120 = vector.load %arg3[%c896, %c0_52] : memref<1024x256xbf16, #tpu.memory_space<vmem>>, vector<128x256xbf16>
    %cst_53 = arith.constant dense<0.000000e+00> : vector<32x256xf32>
    %121 = tpu.matmul %119, %120, %cst_53 {dimension_numbers = #tpu.dot_dimension_numbers<[1], [0], [0], [1], [0, 0, 1, 1], [], []>} : vector<32x128xbf16>, vector<128x256xbf16>, vector<32x256xf32> -> vector<32x256xf32>
    %122 = vector.extract_strided_slice %121 {offsets = [0, 0], sizes = [16, 128], strides = [1, 1]} : vector<32x256xf32> to vector<16x128xf32>
    %123 = vector.extract_strided_slice %121 {offsets = [16, 128], sizes = [16, 128], strides = [1, 1]} : vector<32x256xf32> to vector<16x128xf32>
    %c10 = arith.constant 10 : index
    %c0_54 = arith.constant 0 : index
    %124 = vector.load %arg4[%c10, %c0_54] : memref<16x128xf32, #tpu.memory_space<vmem>>, vector<1x128xf32>
    %125 = vector.broadcast %124 : vector<1x128xf32> to vector<16x128xf32>
    %126 = arith.addf %122, %125 : vector<16x128xf32>
    %127 = arith.negf %126 : vector<16x128xf32>
    %128 = math.exp %127 : vector<16x128xf32>
    %cst_55 = arith.constant 1.000000e+00 : f32
    %129 = vector.broadcast %cst_55 : f32 to vector<16x128xf32>
    %130 = arith.addf %129, %128 : vector<16x128xf32>
    %131 = arith.divf %129, %130 : vector<16x128xf32>
    %c11 = arith.constant 11 : index
    %c0_56 = arith.constant 0 : index
    %132 = vector.load %arg4[%c11, %c0_56] : memref<16x128xf32, #tpu.memory_space<vmem>>, vector<1x128xf32>
    %133 = vector.broadcast %132 : vector<1x128xf32> to vector<16x128xf32>
    %134 = arith.addf %123, %133 : vector<16x128xf32>
    %135 = arith.negf %134 : vector<16x128xf32>
    %136 = math.exp %135 : vector<16x128xf32>
    %cst_57 = arith.constant 1.000000e+00 : f32
    %137 = vector.broadcast %cst_57 : f32 to vector<16x128xf32>
    %138 = arith.addf %137, %136 : vector<16x128xf32>
    %139 = arith.divf %137, %138 : vector<16x128xf32>
    %140 = arith.mulf %131, %87 : vector<16x128xf32>
    %141 = arith.truncf %140 : vector<16x128xf32> to vector<16x128xbf16>
    %142 = arith.mulf %139, %116 : vector<16x128xf32>
    %143 = arith.truncf %142 : vector<16x128xf32> to vector<16x128xbf16>
    %144 = tpu.concatenate %141, %143 in 1 : vector<16x128xbf16>, vector<16x128xbf16> -> vector<16x256xbf16>
    %c1536 = arith.constant 1536 : index
    %c0_58 = arith.constant 0 : index
    %145 = vector.load %arg2[%c1536, %c0_58] : memref<1920x128xbf16, #tpu.memory_space<vmem>>, vector<256x128xbf16>
    %cst_59 = arith.constant dense<0.000000e+00> : vector<16x128xf32>
    %146 = tpu.matmul %144, %145, %cst_59 {dimension_numbers = #tpu.dot_dimension_numbers<[1], [0], [0], [1], [0, 0, 1, 1], [], []>} : vector<16x256xbf16>, vector<256x128xbf16>, vector<16x128xf32> -> vector<16x128xf32>
    %c12 = arith.constant 12 : index
    %c0_60 = arith.constant 0 : index
    %147 = vector.load %arg4[%c12, %c0_60] : memref<16x128xf32, #tpu.memory_space<vmem>>, vector<1x128xf32>
    %148 = vector.broadcast %147 : vector<1x128xf32> to vector<16x128xf32>
    %149 = arith.addf %146, %148 : vector<16x128xf32>
    %cst_61 = arith.constant 0.000000e+00 : f32
    %150 = vector.broadcast %cst_61 : f32 to vector<16x128xf32>
    %151 = arith.maximumf %149, %150 : vector<16x128xf32>
    %152 = arith.truncf %151 : vector<16x128xf32> to vector<16x128xbf16>
    %c1792 = arith.constant 1792 : index
    %c0_62 = arith.constant 0 : index
    %153 = vector.load %arg2[%c1792, %c0_62] : memref<1920x128xbf16, #tpu.memory_space<vmem>>, vector<128x128xbf16>
    %cst_63 = arith.constant dense<0.000000e+00> : vector<16x128xf32>
    %154 = tpu.matmul %152, %153, %cst_63 {dimension_numbers = #tpu.dot_dimension_numbers<[1], [0], [0], [1], [0, 0, 1, 1], [], []>} : vector<16x128xbf16>, vector<128x128xbf16>, vector<16x128xf32> -> vector<16x128xf32>
    %c13 = arith.constant 13 : index
    %c0_64 = arith.constant 0 : index
    %155 = vector.load %arg4[%c13, %c0_64] : memref<16x128xf32, #tpu.memory_space<vmem>>, vector<1x128xf32>
    %156 = vector.broadcast %155 : vector<1x128xf32> to vector<16x128xf32>
    %157 = arith.addf %154, %156 : vector<16x128xf32>
    %cst_65 = arith.constant 0.000000e+00 : f32
    %158 = vector.broadcast %cst_65 : f32 to vector<16x128xf32>
    %159 = arith.maximumf %157, %158 : vector<16x128xf32>
    %160 = arith.truncf %159 : vector<16x128xf32> to vector<16x128xbf16>
    %cst_66 = arith.constant dense<0.000000e+00> : vector<16x128xf32>
    %161 = tpu.matmul %160, %153, %cst_66 {dimension_numbers = #tpu.dot_dimension_numbers<[1], [0], [0], [1], [0, 0, 1, 1], [], []>} : vector<16x128xbf16>, vector<128x128xbf16>, vector<16x128xf32> -> vector<16x128xf32>
    %c14 = arith.constant 14 : index
    %c0_67 = arith.constant 0 : index
    %162 = vector.load %arg4[%c14, %c0_67] : memref<16x128xf32, #tpu.memory_space<vmem>>, vector<1x128xf32>
    %163 = vector.broadcast %162 : vector<1x128xf32> to vector<16x128xf32>
    %164 = arith.addf %161, %163 : vector<16x128xf32>
    %c0_68 = arith.constant 0 : index
    %c0_69 = arith.constant 0 : index
    %165 = vector.load %arg6[%c0_68, %c0_69] : memref<16x128xf32, #tpu.memory_space<vmem>>, vector<16x128xf32>
    tpu.vector_store %arg6[%c0_68, %c0_69], %164 {strides = array<i32>} : memref<16x128xf32, #tpu.memory_space<vmem>>, vector<16x128xf32>,
    return
  }
  func.func @transform_0(%arg0: i32) -> (i32, i32) {
    %c0_i32 = arith.constant 0 : i32
    %c0_i32_0 = arith.constant 0 : i32
    return %arg0, %c0_i32 : i32, i32
  }
  func.func @transform_1(%arg0: i32) -> (i32, i32) {
    %c0_i32 = arith.constant 0 : i32
    %c0_i32_0 = arith.constant 0 : i32
    %c0_i32_1 = arith.constant 0 : i32
    return %c0_i32, %c0_i32_0 : i32, i32
  }
  func.func @transform_2(%arg0: i32) -> (i32, i32) {
    %c0_i32 = arith.constant 0 : i32
    %c0_i32_0 = arith.constant 0 : i32
    %c0_i32_1 = arith.constant 0 : i32
    return %c0_i32, %c0_i32_0 : i32, i32
  }
  func.func @transform_3(%arg0: i32) -> (i32, i32) {
    %c0_i32 = arith.constant 0 : i32
    %c0_i32_0 = arith.constant 0 : i32
    %c0_i32_1 = arith.constant 0 : i32
    return %c0_i32, %c0_i32_0 : i32, i32
  }
  func.func @transform_4(%arg0: i32) -> (i32, i32) {
    %c0_i32 = arith.constant 0 : i32
    %c0_i32_0 = arith.constant 0 : i32
    %c0_i32_1 = arith.constant 0 : i32
    return %c0_i32, %c0_i32_0 : i32, i32
  }
  func.func @transform_5(%arg0: i32) -> (i32, i32) {
    %c0_i32 = arith.constant 0 : i32
    %c0_i32_0 = arith.constant 0 : i32
    return %arg0, %c0_i32 : i32, i32
  }
}

</mosaic_0001>

<llo_original>
// kernel: multimodal_forward.1
$region0: #{multimodal_forward.1}
  #allocation0 [shape = 'u32[]', space=smem, size = 0x4, offset = 0x4, fixed_abs, tag = 'smem constant byte address 0x4 - core index']
  #allocation1 [shape = 'u32[144,128]{1,0:T(1,128)}', space=vmem, size = 0x12000, scoped, tag = 'internal scratch']
  %s0 = inlined_call_operand.vmem [shape: bf16[16,1152], index: 0, kind: input, shape index: {}]
  %s1 = inlined_call_operand.hbm [shape: bf16[1920,128], index: 1, kind: input, shape index: {}]
  %s2 = inlined_call_operand.hbm [shape: bf16[1024,256], index: 2, kind: input, shape index: {}]
  %s3 = inlined_call_operand.vmem [shape: f32[16,128], index: 3, kind: input, shape index: {}]
  %s4 = inlined_call_operand.vmem [shape: f32[8,256], index: 4, kind: input, shape index: {}]
  %s5 = inlined_call_operand.vmem [shape: f32[16,128], index: 5, kind: output, shape index: {}]
  %s6 = sld [smem:[#allocation0]]
  $region38: #{multimodal_forward.1} parent=0
    _
  %s8 = ssub.s32 1, %s6
  %s9 = scalar_select 0, %s8, %s6
  $region1: #{multimodal_forward.1} parent=0
    #allocation2 [shape = 'u8[491520]{0}', space=vmem, size = 0x78000, scoped, tag = 'input window, operand 1, single buffered']
    #allocation3 [shape = 's32[1]{0}', space=sflag, size = 0x4, scoped, tag = 'scoped memory for multimodal_forward.1']
    #allocation4 [shape = 'u8[524288]{0}', space=vmem, size = 0x80000, scoped, tag = 'input window, operand 2, single buffered']
    #allocation5 [shape = 's32[1]{0}', space=sflag, size = 0x4, scoped, tag = 'scoped memory for multimodal_forward.1']
    %10 = vsyncpa [#allocation3], 0
    %11 = vsyncpa [#allocation5], 0
    // Predicated region
    $region2: #{multimodal_forward.1} parent=1 // pred_check
      _
    $region3: #{multimodal_forward.1} parent=1 // pred_check_branch
      %13 = sbr.rel (0) target = $region5
    $region4: #{multimodal_forward.1} parent=1 // pred_region
      _
    $region5: #{multimodal_forward.1} parent=1 // pred_fallthru
      _
    // Predicated region
    $region6: #{multimodal_forward.1} parent=1 // pred_check
      _
    $region7: #{multimodal_forward.1} parent=1 // pred_check_branch
      %15 = sbr.rel (0) target = $region9
    $region8: #{multimodal_forward.1} parent=1 // pred_region
      %s17 = ssub.s32 15360, 15360
      %18 = vsyncadd [#allocation3], %s17
      %s19 = sshll.u32 [#allocation2], 4
      %s20 = int_to_ptr.vmem [resolvable:$true] %s19
      %25 = dma.hbm_to_vmem [thread:$0]  %s1, 15360, %s20, [#allocation3], 64, 64, 4
    $region9: #{multimodal_forward.1} parent=1 // pred_fallthru
      _
    // Predicated region
    $region10: #{multimodal_forward.1} parent=1 // pred_check
      _
    $region11: #{multimodal_forward.1} parent=1 // pred_check_branch
      %27 = sbr.rel (0) target = $region13
    $region12: #{multimodal_forward.1} parent=1 // pred_region
      %s29 = ssub.s32 16384, 16384
      %30 = vsyncadd [#allocation5], %s29
      %s31 = sshll.u32 [#allocation4], 4
      %s32 = int_to_ptr.vmem [resolvable:$true] %s31
      %37 = dma.hbm_to_vmem [thread:$0]  %s2, 16384, %s32, [#allocation5], 128, 128, 8
    $region13: #{multimodal_forward.1} parent=1 // pred_fallthru
      _
    // Predicated region
    $region14: #{multimodal_forward.1} parent=1 // pred_check
      _
    $region15: #{multimodal_forward.1} parent=1 // pred_check_branch
      %39 = sbr.rel (0) target = $region17
    $region16: #{multimodal_forward.1} parent=1 // pred_region
      _
    $region17: #{multimodal_forward.1} parent=1 // pred_fallthru
      _
    // Predicated region
    $region18: #{multimodal_forward.1} parent=1 // pred_check
      _
    $region19: #{multimodal_forward.1} parent=1 // pred_check_branch
      %41 = sbr.rel (0) target = $region21
    $region20: #{multimodal_forward.1} parent=1 // pred_region
      _
    $region21: #{multimodal_forward.1} parent=1 // pred_fallthru
      _
    // Predicated region
    $region22: #{multimodal_forward.1} parent=1 // pred_check
      _
    $region23: #{multimodal_forward.1} parent=1 // pred_check_branch
      %43 = sbr.rel (0) target = $region25
    $region24: #{multimodal_forward.1} parent=1 // pred_region
      %44 = dma.done [#allocation3], 15360
    $region25: #{multimodal_forward.1} parent=1 // pred_fallthru
      _
    // Predicated region
    $region26: #{multimodal_forward.1} parent=1 // pred_check
      _
    $region27: #{multimodal_forward.1} parent=1 // pred_check_branch
      %46 = sbr.rel (0) target = $region29
    $region28: #{multimodal_forward.1} parent=1 // pred_region
      %47 = dma.done [#allocation5], 16384
    $region29: #{multimodal_forward.1} parent=1 // pred_fallthru
      _
    %v49 = vld [vmem:[%s0] sm:$0xff]
    %v50 = vld [vmem:[%s0 + $0x8] sm:$0xff]
    %v51 = vld [vmem:[%s0 + $0x10] sm:$0xff]
    %v52 = vld [vmem:[%s0 + $0x18] sm:$0xff]
    %v53 = vld [vmem:[%s0 + $0x24] sm:$0xff]
    %v54 = vld [vmem:[%s0 + $0x2c] sm:$0xff]
    %v55 = vld [vmem:[%s0 + $0x34] sm:$0xff]
    %v56 = vld [vmem:[%s0 + $0x3c] sm:$0xff]
    %v57 = vld [vmem:[%s0 + $0x20] sm:$0xf]
    %v58 = vld [vmem:[%s0 + $0x44] sm:$0xf]
    %v59 = vld [vmem:[#allocation2] sm:$0xf]
    %v60 = vld [vmem:[#allocation2 + $0x4] sm:$0xf]
    %v61 = vld [vmem:[#allocation2 + $0x8] sm:$0xf]
    %v62 = vld [vmem:[#allocation2 + $0xc] sm:$0xf]
    %v63 = vld [vmem:[#allocation2 + $0x10] sm:$0xf]
    %v64 = vld [vmem:[#allocation2 + $0x14] sm:$0xf]
    %v65 = vld [vmem:[#allocation2 + $0x18] sm:$0xf]
    %v66 = vld [vmem:[#allocation2 + $0x1c] sm:$0xf]
    %v67 = vld [vmem:[#allocation2 + $0x20] sm:$0xf]
    %v68 = vld [vmem:[#allocation2 + $0x24] sm:$0xf]
    %v69 = vld [vmem:[#allocation2 + $0x28] sm:$0xf]
    %v70 = vld [vmem:[#allocation2 + $0x2c] sm:$0xf]
    %v71 = vld [vmem:[#allocation2 + $0x30] sm:$0xf]
    %v72 = vld [vmem:[#allocation2 + $0x34] sm:$0xf]
    %v73 = vld [vmem:[#allocation2 + $0x38] sm:$0xf]
    %v74 = vld [vmem:[#allocation2 + $0x3c] sm:$0xf]
    %v75 = vld [vmem:[#allocation2 + $0x40] sm:$0xf]
    %v76 = vld [vmem:[#allocation2 + $0x44] sm:$0xf]
    %v77 = vld [vmem:[#allocation2 + $0x48] sm:$0xf]
    %v78 = vld [vmem:[#allocation2 + $0x4c] sm:$0xf]
    %v79 = vld [vmem:[#allocation2 + $0x50] sm:$0xf]
    %v80 = vld [vmem:[#allocation2 + $0x54] sm:$0xf]
    %v81 = vld [vmem:[#allocation2 + $0x58] sm:$0xf]
    %v82 = vld [vmem:[#allocation2 + $0x5c] sm:$0xf]
    %v83 = vld [vmem:[#allocation2 + $0x60] sm:$0xf]
    %v84 = vld [vmem:[#allocation2 + $0x64] sm:$0xf]
    %v85 = vld [vmem:[#allocation2 + $0x68] sm:$0xf]
    %v86 = vld [vmem:[#allocation2 + $0x6c] sm:$0xf]
    %v87 = vld [vmem:[#allocation2 + $0x70] sm:$0xf]
    %v88 = vld [vmem:[#allocation2 + $0x74] sm:$0xf]
    %v89 = vld [vmem:[#allocation2 + $0x78] sm:$0xf]
    %v90 = vld [vmem:[#allocation2 + $0x7c] sm:$0xf]
    %v91 = vld [vmem:[#allocation2 + $0x80] sm:$0xf]
    %v92 = vld [vmem:[#allocation2 + $0x84] sm:$0xf]
    %v93 = vld [vmem:[#allocation2 + $0x88] sm:$0xf]
    %v94 = vld [vmem:[#allocation2 + $0x8c] sm:$0xf]
    %v95 = vld [vmem:[#allocation2 + $0x90] sm:$0xf]
    %v96 = vld [vmem:[#allocation2 + $0x94] sm:$0xf]
    %v97 = vld [vmem:[#allocation2 + $0x98] sm:$0xf]
    %v98 = vld [vmem:[#allocation2 + $0x9c] sm:$0xf]
    %v99 = vld [vmem:[#allocation2 + $0xa0] sm:$0xf]
    %v100 = vld [vmem:[#allocation2 + $0xa4] sm:$0xf]
    %v101 = vld [vmem:[#allocation2 + $0xa8] sm:$0xf]
    %v102 = vld [vmem:[#allocation2 + $0xac] sm:$0xf]
    %v103 = vld [vmem:[#allocation2 + $0xb0] sm:$0xf]
    %v104 = vld [vmem:[#allocation2 + $0xb4] sm:$0xf]
    %v105 = vld [vmem:[#allocation2 + $0xb8] sm:$0xf]
    %v106 = vld [vmem:[#allocation2 + $0xbc] sm:$0xf]
    %v107 = vld [vmem:[#allocation2 + $0xc0] sm:$0xf]
    %v108 = vld [vmem:[#allocation2 + $0xc4] sm:$0xf]
    %v109 = vld [vmem:[#allocation2 + $0xc8] sm:$0xf]
    %v110 = vld [vmem:[#allocation2 + $0xcc] sm:$0xf]
    %v111 = vld [vmem:[#allocation2 + $0xd0] sm:$0xf]
    %v112 = vld [vmem:[#allocation2 + $0xd4] sm:$0xf]
    %v113 = vld [vmem:[#allocation2 + $0xd8] sm:$0xf]
    %v114 = vld [vmem:[#allocation2 + $0xdc] sm:$0xf]
    %v115 = vld [vmem:[#allocation2 + $0xe0] sm:$0xf]
    %v116 = vld [vmem:[#allocation2 + $0xe4] sm:$0xf]
    %v117 = vld [vmem:[#allocation2 + $0xe8] sm:$0xf]
    %v118 = vld [vmem:[#allocation2 + $0xec] sm:$0xf]
    %v119 = vld [vmem:[#allocation2 + $0xf0] sm:$0xf]
    %v120 = vld [vmem:[#allocation2 + $0xf4] sm:$0xf]
    %v121 = vld [vmem:[#allocation2 + $0xf8] sm:$0xf]
    %v122 = vld [vmem:[#allocation2 + $0xfc] sm:$0xf]
    %v123 = vld [vmem:[#allocation2 + $0x100] sm:$0xf]
    %v124 = vld [vmem:[#allocation2 + $0x104] sm:$0xf]
    %v125 = vld [vmem:[#allocation2 + $0x108] sm:$0xf]
    %v126 = vld [vmem:[#allocation2 + $0x10c] sm:$0xf]
    %v127 = vld [vmem:[#allocation2 + $0x110] sm:$0xf]
    %v128 = vld [vmem:[#allocation2 + $0x114] sm:$0xf]
    %v129 = vld [vmem:[#allocation2 + $0x118] sm:$0xf]
    %v130 = vld [vmem:[#allocation2 + $0x11c] sm:$0xf]
    %v131 = vld [vmem:[#allocation2 + $0x120] sm:$0xf]
    %v132 = vld [vmem:[#allocation2 + $0x124] sm:$0xf]
    %v133 = vld [vmem:[#allocation2 + $0x128] sm:$0xf]
    %v134 = vld [vmem:[#allocation2 + $0x12c] sm:$0xf]
    %v135 = vld [vmem:[#allocation2 + $0x130] sm:$0xf]
    %v136 = vld [vmem:[#allocation2 + $0x134] sm:$0xf]
    %v137 = vld [vmem:[#allocation2 + $0x138] sm:$0xf]
    %v138 = vld [vmem:[#allocation2 + $0x13c] sm:$0xf]
    %v139 = vld [vmem:[#allocation2 + $0x140] sm:$0xf]
    %v140 = vld [vmem:[#allocation2 + $0x144] sm:$0xf]
    %v141 = vld [vmem:[#allocation2 + $0x148] sm:$0xf]
    %v142 = vld [vmem:[#allocation2 + $0x14c] sm:$0xf]
    %v143 = vld [vmem:[#allocation2 + $0x150] sm:$0xf]
    %v144 = vld [vmem:[#allocation2 + $0x154] sm:$0xf]
    %v145 = vld [vmem:[#allocation2 + $0x158] sm:$0xf]
    %v146 = vld [vmem:[#allocation2 + $0x15c] sm:$0xf]
    %v147 = vld [vmem:[#allocation2 + $0x160] sm:$0xf]
    %v148 = vld [vmem:[#allocation2 + $0x164] sm:$0xf]
    %v149 = vld [vmem:[#allocation2 + $0x168] sm:$0xf]
    %v150 = vld [vmem:[#allocation2 + $0x16c] sm:$0xf]
    %v151 = vld [vmem:[#allocation2 + $0x170] sm:$0xf]
    %v152 = vld [vmem:[#allocation2 + $0x174] sm:$0xf]
    %v153 = vld [vmem:[#allocation2 + $0x178] sm:$0xf]
    %v154 = vld [vmem:[#allocation2 + $0x17c] sm:$0xf]
    %v155 = vld [vmem:[#allocation2 + $0x180] sm:$0xf]
    %v156 = vld [vmem:[#allocation2 + $0x184] sm:$0xf]
    %v157 = vld [vmem:[#allocation2 + $0x188] sm:$0xf]
    %v158 = vld [vmem:[#allocation2 + $0x18c] sm:$0xf]
    %v159 = vld [vmem:[#allocation2 + $0x190] sm:$0xf]
    %v160 = vld [vmem:[#allocation2 + $0x194] sm:$0xf]
    %v161 = vld [vmem:[#allocation2 + $0x198] sm:$0xf]
    %v162 = vld [vmem:[#allocation2 + $0x19c] sm:$0xf]
    %v163 = vld [vmem:[#allocation2 + $0x1a0] sm:$0xf]
    %v164 = vld [vmem:[#allocation2 + $0x1a4] sm:$0xf]
    %v165 = vld [vmem:[#allocation2 + $0x1a8] sm:$0xf]
    %v166 = vld [vmem:[#allocation2 + $0x1ac] sm:$0xf]
    %v167 = vld [vmem:[#allocation2 + $0x1b0] sm:$0xf]
    %v168 = vld [vmem:[#allocation2 + $0x1b4] sm:$0xf]
    %v169 = vld [vmem:[#allocation2 + $0x1b8] sm:$0xf]
    %v170 = vld [vmem:[#allocation2 + $0x1bc] sm:$0xf]
    %v171 = vld [vmem:[#allocation2 + $0x1c0] sm:$0xf]
    %v172 = vld [vmem:[#allocation2 + $0x1c4] sm:$0xf]
    %v173 = vld [vmem:[#allocation2 + $0x1c8] sm:$0xf]
    %v174 = vld [vmem:[#allocation2 + $0x1cc] sm:$0xf]
    %v175 = vld [vmem:[#allocation2 + $0x1d0] sm:$0xf]
    %v176 = vld [vmem:[#allocation2 + $0x1d4] sm:$0xf]
    %v177 = vld [vmem:[#allocation2 + $0x1d8] sm:$0xf]
    %v178 = vld [vmem:[#allocation2 + $0x1dc] sm:$0xf]
    %v179 = vld [vmem:[#allocation2 + $0x1e0] sm:$0xf]
    %v180 = vld [vmem:[#allocation2 + $0x1e4] sm:$0xf]
    %v181 = vld [vmem:[#allocation2 + $0x1e8] sm:$0xf]
    %v182 = vld [vmem:[#allocation2 + $0x1ec] sm:$0xf]
    %v183 = vld [vmem:[#allocation2 + $0x1f0] sm:$0xf]
    %v184 = vld [vmem:[#allocation2 + $0x1f4] sm:$0xf]
    %v185 = vld [vmem:[#allocation2 + $0x1f8] sm:$0xf]
    %v186 = vld [vmem:[#allocation2 + $0x1fc] sm:$0xf]
    %v187 = vld [vmem:[%s3] sm:$0x1]
    %v188 = vlaneseq
    %v189 = vshrl.u32 %v188, 7
    %v190 = vsub.s32 0, %v189
    %v191 = vrot.slane %v187, %v190
    %v200 = vunpack.c.l.b16 %v49
    %v201 = vunpack.c.h.b16 %v49
    %v202 = vunpack.c.l.b16 %v50
    %v203 = vunpack.c.h.b16 %v50
    %v204 = vunpack.c.l.b16 %v51
    %v205 = vunpack.c.h.b16 %v51
    %v206 = vunpack.c.l.b16 %v52
    %v207 = vunpack.c.h.b16 %v52
    %v208 = vunpack.c.l.b16 %v53
    %v209 = vunpack.c.h.b16 %v53
    %v210 = vunpack.c.l.b16 %v54
    %v211 = vunpack.c.h.b16 %v54
    %v212 = vunpack.c.l.b16 %v55
    %v213 = vunpack.c.h.b16 %v55
    %v214 = vunpack.c.l.b16 %v56
    %v215 = vunpack.c.h.b16 %v56
    %v216 = vpack.c.b16 %v208, %v200
    %v217 = vpack.c.b16 %v209, %v201
    %v218 = vpack.c.b16 %v210, %v202
    %v219 = vpack.c.b16 %v211, %v203
    %v220 = vpack.c.b16 %v212, %v204
    %v221 = vpack.c.b16 %v213, %v205
    %v222 = vpack.c.b16 %v214, %v206
    %v223 = vpack.c.b16 %v215, %v207
    %v360 = vunpack.c.l.b16 %v59
    %v361 = vunpack.c.l.b16 %v60
    %v362 = vunpack.c.l.b16 %v61
    %v363 = vunpack.c.l.b16 %v62
    %v364 = vunpack.c.l.b16 %v63
    %v365 = vunpack.c.l.b16 %v64
    %v366 = vunpack.c.l.b16 %v65
    %v367 = vunpack.c.l.b16 %v66
    %v368 = vunpack.c.l.b16 %v67
    %v369 = vunpack.c.l.b16 %v68
    %v370 = vunpack.c.l.b16 %v69
    %v371 = vunpack.c.l.b16 %v70
    %v372 = vunpack.c.l.b16 %v71
    %v373 = vunpack.c.l.b16 %v72
    %v374 = vunpack.c.l.b16 %v73
    %v375 = vunpack.c.l.b16 %v74
    %v376 = vunpack.c.l.b16 %v75
    %v377 = vunpack.c.l.b16 %v76
    %v378 = vunpack.c.l.b16 %v77
    %v379 = vunpack.c.l.b16 %v78
    %v380 = vunpack.c.l.b16 %v79
    %v381 = vunpack.c.l.b16 %v80
    %v382 = vunpack.c.l.b16 %v81
    %v383 = vunpack.c.l.b16 %v82
    %v384 = vunpack.c.l.b16 %v83
    %v385 = vunpack.c.l.b16 %v84
    %v386 = vunpack.c.l.b16 %v85
    %v387 = vunpack.c.l.b16 %v86
    %v388 = vunpack.c.l.b16 %v87
    %v389 = vunpack.c.l.b16 %v88
    %v390 = vunpack.c.l.b16 %v89
    %v391 = vunpack.c.l.b16 %v90
    %v392 = vunpack.c.l.b16 %v91
    %v393 = vunpack.c.l.b16 %v92
    %v394 = vunpack.c.l.b16 %v93
    %v395 = vunpack.c.l.b16 %v94
    %v396 = vunpack.c.l.b16 %v95
    %v397 = vunpack.c.l.b16 %v96
    %v398 = vunpack.c.l.b16 %v97
    %v399 = vunpack.c.l.b16 %v98
    %v400 = vunpack.c.l.b16 %v99
    %v401 = vunpack.c.l.b16 %v100
    %v402 = vunpack.c.l.b16 %v101
    %v403 = vunpack.c.l.b16 %v102
    %v404 = vunpack.c.l.b16 %v103
    %v405 = vunpack.c.l.b16 %v104
    %v406 = vunpack.c.l.b16 %v105
    %v407 = vunpack.c.l.b16 %v106
    %v408 = vunpack.c.l.b16 %v107
    %v409 = vunpack.c.l.b16 %v108
    %v410 = vunpack.c.l.b16 %v109
    %v411 = vunpack.c.l.b16 %v110
    %v412 = vunpack.c.l.b16 %v111
    %v413 = vunpack.c.l.b16 %v112
    %v414 = vunpack.c.l.b16 %v113
    %v415 = vunpack.c.l.b16 %v114
    %v416 = vunpack.c.l.b16 %v115
    %v417 = vunpack.c.l.b16 %v116
    %v418 = vunpack.c.l.b16 %v117
    %v419 = vunpack.c.l.b16 %v118
    %v420 = vunpack.c.l.b16 %v119
    %v421 = vunpack.c.l.b16 %v120
    %v422 = vunpack.c.l.b16 %v121
    %v423 = vunpack.c.l.b16 %v122
    %v424 = vunpack.c.l.b16 %v123
    %v425 = vunpack.c.l.b16 %v124
    %v426 = vunpack.c.l.b16 %v125
    %v427 = vunpack.c.l.b16 %v126
    %v428 = vunpack.c.l.b16 %v127
    %v429 = vunpack.c.l.b16 %v128
    %v430 = vunpack.c.l.b16 %v129
    %v431 = vunpack.c.l.b16 %v130
    %v432 = vunpack.c.l.b16 %v131
    %v433 = vunpack.c.l.b16 %v132
    %v434 = vunpack.c.l.b16 %v133
    %v435 = vunpack.c.l.b16 %v134
    %v436 = vunpack.c.l.b16 %v135
    %v437 = vunpack.c.l.b16 %v136
    %v438 = vunpack.c.l.b16 %v137
    %v439 = vunpack.c.l.b16 %v138
    %v440 = vunpack.c.l.b16 %v139
    %v441 = vunpack.c.l.b16 %v140
    %v442 = vunpack.c.l.b16 %v141
    %v443 = vunpack.c.l.b16 %v142
    %v444 = vunpack.c.l.b16 %v143
    %v445 = vunpack.c.l.b16 %v144
    %v446 = vunpack.c.l.b16 %v145
    %v447 = vunpack.c.l.b16 %v146
    %v448 = vunpack.c.l.b16 %v147
    %v449 = vunpack.c.l.b16 %v148
    %v450 = vunpack.c.l.b16 %v149
    %v451 = vunpack.c.l.b16 %v150
    %v452 = vunpack.c.l.b16 %v151
    %v453 = vunpack.c.l.b16 %v152
    %v454 = vunpack.c.l.b16 %v153
    %v455 = vunpack.c.l.b16 %v154
    %v456 = vunpack.c.l.b16 %v155
    %v457 = vunpack.c.l.b16 %v156
    %v458 = vunpack.c.l.b16 %v157
    %v459 = vunpack.c.l.b16 %v158
    %v460 = vunpack.c.l.b16 %v159
    %v461 = vunpack.c.l.b16 %v160
    %v462 = vunpack.c.l.b16 %v161
    %v463 = vunpack.c.l.b16 %v162
    %v464 = vunpack.c.l.b16 %v163
    %v465 = vunpack.c.l.b16 %v164
    %v466 = vunpack.c.l.b16 %v165
    %v467 = vunpack.c.l.b16 %v166
    %v468 = vunpack.c.l.b16 %v167
    %v469 = vunpack.c.l.b16 %v168
    %v470 = vunpack.c.l.b16 %v169
    %v471 = vunpack.c.l.b16 %v170
    %v472 = vunpack.c.l.b16 %v171
    %v473 = vunpack.c.l.b16 %v172
    %v474 = vunpack.c.l.b16 %v173
    %v475 = vunpack.c.l.b16 %v174
    %v476 = vunpack.c.l.b16 %v175
    %v477 = vunpack.c.l.b16 %v176
    %v478 = vunpack.c.l.b16 %v177
    %v479 = vunpack.c.l.b16 %v178
    %v480 = vunpack.c.l.b16 %v179
    %v481 = vunpack.c.l.b16 %v180
    %v482 = vunpack.c.l.b16 %v181
    %v483 = vunpack.c.l.b16 %v182
    %v484 = vunpack.c.l.b16 %v183
    %v485 = vunpack.c.l.b16 %v184
    %v486 = vunpack.c.l.b16 %v185
    %v487 = vunpack.c.l.b16 %v186
    %v488 = vpack.c.b16 %v361, %v360
    %v489 = vpack.c.b16 %v363, %v362
    %v490 = vpack.c.b16 %v365, %v364
    %v491 = vpack.c.b16 %v367, %v366
    %v492 = vpack.c.b16 %v369, %v368
    %v493 = vpack.c.b16 %v371, %v370
    %v494 = vpack.c.b16 %v373, %v372
    %v495 = vpack.c.b16 %v375, %v374
    %v496 = vpack.c.b16 %v377, %v376
    %v497 = vpack.c.b16 %v379, %v378
    %v498 = vpack.c.b16 %v381, %v380
    %v499 = vpack.c.b16 %v383, %v382
    %v500 = vpack.c.b16 %v385, %v384
    %v501 = vpack.c.b16 %v387, %v386
    %v502 = vpack.c.b16 %v389, %v388
    %v503 = vpack.c.b16 %v391, %v390
    %v504 = vpack.c.b16 %v393, %v392
    %v505 = vpack.c.b16 %v395, %v394
    %v506 = vpack.c.b16 %v397, %v396
    %v507 = vpack.c.b16 %v399, %v398
    %v508 = vpack.c.b16 %v401, %v400
    %v509 = vpack.c.b16 %v403, %v402
    %v510 = vpack.c.b16 %v405, %v404
    %v511 = vpack.c.b16 %v407, %v406
    %v512 = vpack.c.b16 %v409, %v408
    %v513 = vpack.c.b16 %v411, %v410
    %v514 = vpack.c.b16 %v413, %v412
    %v515 = vpack.c.b16 %v415, %v414
    %v516 = vpack.c.b16 %v417, %v416
    %v517 = vpack.c.b16 %v419, %v418
    %v518 = vpack.c.b16 %v421, %v420
    %v519 = vpack.c.b16 %v423, %v422
    %v520 = vpack.c.b16 %v425, %v424
    %v521 = vpack.c.b16 %v427, %v426
    %v522 = vpack.c.b16 %v429, %v428
    %v523 = vpack.c.b16 %v431, %v430
    %v524 = vpack.c.b16 %v433, %v432
    %v525 = vpack.c.b16 %v435, %v434
    %v526 = vpack.c.b16 %v437, %v436
    %v527 = vpack.c.b16 %v439, %v438
    %v528 = vpack.c.b16 %v441, %v440
    %v529 = vpack.c.b16 %v443, %v442
    %v530 = vpack.c.b16 %v445, %v444
    %v531 = vpack.c.b16 %v447, %v446
    %v532 = vpack.c.b16 %v449, %v448
    %v533 = vpack.c.b16 %v451, %v450
    %v534 = vpack.c.b16 %v453, %v452
    %v535 = vpack.c.b16 %v455, %v454
    %v536 = vpack.c.b16 %v457, %v456
    %v537 = vpack.c.b16 %v459, %v458
    %v538 = vpack.c.b16 %v461, %v460
    %v539 = vpack.c.b16 %v463, %v462
    %v540 = vpack.c.b16 %v465, %v464
    %v541 = vpack.c.b16 %v467, %v466
    %v542 = vpack.c.b16 %v469, %v468
    %v543 = vpack.c.b16 %v471, %v470
    %v544 = vpack.c.b16 %v473, %v472
    %v545 = vpack.c.b16 %v475, %v474
    %v546 = vpack.c.b16 %v477, %v476
    %v547 = vpack.c.b16 %v479, %v478
    %v548 = vpack.c.b16 %v481, %v480
    %v549 = vpack.c.b16 %v483, %v482
    %v550 = vpack.c.b16 %v485, %v484
    %v551 = vpack.c.b16 %v487, %v486
    %616 = vmatprep.subr.bf16.mxu0 0
    %617 = vmatpush1.bf16.msra.mxu0 %v488
    %618 = vmatprep.subr.bf16.mxu0 0
    %619 = vmatpush1.bf16.msra.mxu0 %v489
    %620 = vmatprep.subr.bf16.mxu0 0
    %621 = vmatpush1.bf16.msra.mxu0 %v490
    %622 = vmatprep.subr.bf16.mxu0 0
    %623 = vmatpush1.bf16.msra.mxu0 %v491
    %624 = vmatprep.subr.bf16.mxu0 0
    %625 = vmatpush1.bf16.msra.mxu0 %v492
    %626 = vmatprep.subr.bf16.mxu0 0
    %627 = vmatpush1.bf16.msra.mxu0 %v493
    %628 = vmatprep.subr.bf16.mxu0 0
    %629 = vmatpush1.bf16.msra.mxu0 %v494
    %630 = vmatprep.subr.bf16.mxu0 0
    %631 = vmatpush1.bf16.msra.mxu0 %v495
    %632 = vmatprep.subr.bf16.mxu0 0
    %633 = vmatpush1.bf16.msra.mxu0 %v496
    %634 = vmatprep.subr.bf16.mxu0 0
    %635 = vmatpush1.bf16.msra.mxu0 %v497
    %636 = vmatprep.subr.bf16.mxu0 0
    %637 = vmatpush1.bf16.msra.mxu0 %v498
    %638 = vmatprep.subr.bf16.mxu0 0
    %639 = vmatpush1.bf16.msra.mxu0 %v499
    %640 = vmatprep.subr.bf16.mxu0 0
    %641 = vmatpush1.bf16.msra.mxu0 %v500
    %642 = vmatprep.subr.bf16.mxu0 0
    %643 = vmatpush1.bf16.msra.mxu0 %v501
    %644 = vmatprep.subr.bf16.mxu0 0
    %645 = vmatpush1.bf16.msra.mxu0 %v502
    %646 = vmatprep.subr.bf16.mxu0 0
    %647 = vmatpush1.bf16.msra.mxu0 %v503
    %648 = vmatprep.mubr.bf16.mxu0 %v217
    %649 = vmatmul.mubr.bf16.gmra.mrb[0].mxu0 %v216
    %v650 = vpop.f32.mrb[0].mxu0
    %v651 = vadd.f32 %v191, %v650
    %v652 = vpop.f32.mrb[0].mxu0
    %v653 = vpop.f32.mrb[0].mxu0
    %v654 = vadd.f32 %v191, %v653
    %v655 = vpop.f32.mrb[0].mxu0
    %656 = vdwg.mxu0
    %657 = vmatprep.subr.bf16.mxu0 0
    %658 = vmatpush1.bf16.msra.mxu0 %v504
    %659 = vmatprep.subr.bf16.mxu0 0
    %660 = vmatpush1.bf16.msra.mxu0 %v505
    %661 = vmatprep.subr.bf16.mxu0 0
    %662 = vmatpush1.bf16.msra.mxu0 %v506
    %663 = vmatprep.subr.bf16.mxu0 0
    %664 = vmatpush1.bf16.msra.mxu0 %v507
    %665 = vmatprep.subr.bf16.mxu0 0
    %666 = vmatpush1.bf16.msra.mxu0 %v508
    %667 = vmatprep.subr.bf16.mxu0 0
    %668 = vmatpush1.bf16.msra.mxu0 %v509
    %669 = vmatprep.subr.bf16.mxu0 0
    %670 = vmatpush1.bf16.msra.mxu0 %v510
    %671 = vmatprep.subr.bf16.mxu0 0
    %672 = vmatpush1.bf16.msra.mxu0 %v511
    %673 = vmatprep.subr.bf16.mxu0 0
    %674 = vmatpush1.bf16.msra.mxu0 %v512
    %675 = vmatprep.subr.bf16.mxu0 0
    %676 = vmatpush1.bf16.msra.mxu0 %v513
    %677 = vmatprep.subr.bf16.mxu0 0
    %678 = vmatpush1.bf16.msra.mxu0 %v514
    %679 = vmatprep.subr.bf16.mxu0 0
    %680 = vmatpush1.bf16.msra.mxu0 %v515
    %681 = vmatprep.subr.bf16.mxu0 0
    %682 = vmatpush1.bf16.msra.mxu0 %v516
    %683 = vmatprep.subr.bf16.mxu0 0
    %684 = vmatpush1.bf16.msra.mxu0 %v517
    %685 = vmatprep.subr.bf16.mxu0 0
    %686 = vmatpush1.bf16.msra.mxu0 %v518
    %687 = vmatprep.subr.bf16.mxu0 0
    %688 = vmatpush1.bf16.msra.mxu0 %v519
    %689 = vmatprep.mubr.bf16.mxu0 %v219
    %690 = vmatmul.mubr.bf16.gmra.mrb[0].mxu0 %v218
    %v691 = vpop.f32.mrb[0].mxu0
    %v692 = vadd.f32 %v651, %v691
    %v693 = vpop.f32.mrb[0].mxu0
    %v694 = vpop.f32.mrb[0].mxu0
    %v695 = vadd.f32 %v654, %v694
    %v696 = vpop.f32.mrb[0].mxu0
    %697 = vdwg.mxu0
    %698 = vmatprep.subr.bf16.mxu0 0
    %699 = vmatpush1.bf16.msra.mxu0 %v520
    %700 = vmatprep.subr.bf16.mxu0 0
    %701 = vmatpush1.bf16.msra.mxu0 %v521
    %702 = vmatprep.subr.bf16.mxu0 0
    %703 = vmatpush1.bf16.msra.mxu0 %v522
    %704 = vmatprep.subr.bf16.mxu0 0
    %705 = vmatpush1.bf16.msra.mxu0 %v523
    %706 = vmatprep.subr.bf16.mxu0 0
    %707 = vmatpush1.bf16.msra.mxu0 %v524
    %708 = vmatprep.subr.bf16.mxu0 0
    %709 = vmatpush1.bf16.msra.mxu0 %v525
    %710 = vmatprep.subr.bf16.mxu0 0
    %711 = vmatpush1.bf16.msra.mxu0 %v526
    %712 = vmatprep.subr.bf16.mxu0 0
    %713 = vmatpush1.bf16.msra.mxu0 %v527
    %714 = vmatprep.subr.bf16.mxu0 0
    %715 = vmatpush1.bf16.msra.mxu0 %v528
    %716 = vmatprep.subr.bf16.mxu0 0
    %717 = vmatpush1.bf16.msra.mxu0 %v529
    %718 = vmatprep.subr.bf16.mxu0 0
    %719 = vmatpush1.bf16.msra.mxu0 %v530
    %720 = vmatprep.subr.bf16.mxu0 0
    %721 = vmatpush1.bf16.msra.mxu0 %v531
    %722 = vmatprep.subr.bf16.mxu0 0
    %723 = vmatpush1.bf16.msra.mxu0 %v532
    %724 = vmatprep.subr.bf16.mxu0 0
    %725 = vmatpush1.bf16.msra.mxu0 %v533
    %726 = vmatprep.subr.bf16.mxu0 0
    %727 = vmatpush1.bf16.msra.mxu0 %v534
    %728 = vmatprep.subr.bf16.mxu0 0
    %729 = vmatpush1.bf16.msra.mxu0 %v535
    %730 = vmatprep.mubr.bf16.mxu0 %v221
    %731 = vmatmul.mubr.bf16.gmra.mrb[0].mxu0 %v220
    %v732 = vpop.f32.mrb[0].mxu0
    %v733 = vadd.f32 %v692, %v732
    %v734 = vpop.f32.mrb[0].mxu0
    %v735 = vpop.f32.mrb[0].mxu0
    %v736 = vadd.f32 %v695, %v735
    %v737 = vpop.f32.mrb[0].mxu0
    %738 = vdwg.mxu0
    %739 = vmatprep.subr.bf16.mxu0 0
    %740 = vmatpush1.bf16.msra.mxu0 %v536
    %741 = vmatprep.subr.bf16.mxu0 0
    %742 = vmatpush1.bf16.msra.mxu0 %v537
    %743 = vmatprep.subr.bf16.mxu0 0
    %744 = vmatpush1.bf16.msra.mxu0 %v538
    %745 = vmatprep.subr.bf16.mxu0 0
    %746 = vmatpush1.bf16.msra.mxu0 %v539
    %747 = vmatprep.subr.bf16.mxu0 0
    %748 = vmatpush1.bf16.msra.mxu0 %v540
    %749 = vmatprep.subr.bf16.mxu0 0
    %750 = vmatpush1.bf16.msra.mxu0 %v541
    %751 = vmatprep.subr.bf16.mxu0 0
    %752 = vmatpush1.bf16.msra.mxu0 %v542
    %753 = vmatprep.subr.bf16.mxu0 0
    %754 = vmatpush1.bf16.msra.mxu0 %v543
    %755 = vmatprep.subr.bf16.mxu0 0
    %756 = vmatpush1.bf16.msra.mxu0 %v544
    %757 = vmatprep.subr.bf16.mxu0 0
    %758 = vmatpush1.bf16.msra.mxu0 %v545
    %759 = vmatprep.subr.bf16.mxu0 0
    %760 = vmatpush1.bf16.msra.mxu0 %v546
    %761 = vmatprep.subr.bf16.mxu0 0
    %762 = vmatpush1.bf16.msra.mxu0 %v547
    %763 = vmatprep.subr.bf16.mxu0 0
    %764 = vmatpush1.bf16.msra.mxu0 %v548
    %765 = vmatprep.subr.bf16.mxu0 0
    %766 = vmatpush1.bf16.msra.mxu0 %v549
    %767 = vmatprep.subr.bf16.mxu0 0
    %768 = vmatpush1.bf16.msra.mxu0 %v550
    %769 = vmatprep.subr.bf16.mxu0 0
    %770 = vmatpush1.bf16.msra.mxu0 %v551
    %771 = vmatprep.mubr.bf16.mxu0 %v223
    %772 = vmatmul.mubr.bf16.gmra.mrb[0].mxu0 %v222
    %v773 = vpop.f32.mrb[0].mxu0
    %v774 = vadd.f32 %v733, %v773
    %v775 = vpop.f32.mrb[0].mxu0
    %v776 = vpop.f32.mrb[0].mxu0
    %v777 = vadd.f32 %v736, %v776
    %v778 = vpop.f32.mrb[0].mxu0
    %779 = vdwg.mxu0
    %v780 = vld [vmem:[#allocation4] sm:$0xff]
    %v781 = vld [vmem:[#allocation4 + $0x8] sm:$0xff]
    %v782 = vld [vmem:[#allocation4 + $0x10] sm:$0xff]
    %v783 = vld [vmem:[#allocation4 + $0x18] sm:$0xff]
    %v784 = vld [vmem:[#allocation4 + $0x20] sm:$0xff]
    %v785 = vld [vmem:[#allocation4 + $0x28] sm:$0xff]
    %v786 = vld [vmem:[#allocation4 + $0x30] sm:$0xff]
    %v787 = vld [vmem:[#allocation4 + $0x38] sm:$0xff]
    %v788 = vld [vmem:[#allocation4 + $0x40] sm:$0xff]
    %v789 = vld [vmem:[#allocation4 + $0x48] sm:$0xff]
    %v790 = vld [vmem:[#allocation4 + $0x50] sm:$0xff]
    %v791 = vld [vmem:[#allocation4 + $0x58] sm:$0xff]
    %v792 = vld [vmem:[#allocation4 + $0x60] sm:$0xff]
    %v793 = vld [vmem:[#allocation4 + $0x68] sm:$0xff]
    %v794 = vld [vmem:[#allocation4 + $0x70] sm:$0xff]
    %v795 = vld [vmem:[#allocation4 + $0x78] sm:$0xff]
    %v796 = vld [vmem:[%s4] ss:$8 sm:$0x3]
    %v798 = vlaneseq
    %v799 = vshrl.u32 %v798, 7
    %v800 = vsub.s32 0, %v799
    %v801 = vrot.slane %v796, %v800
    %v802 = vlaneseq
    %v803 = vshrl.u32 %v802, 7
    %v804 = vsub.s32 1, %v803
    %v805 = vrot.slane %v796, %v804
    %v810 = vunpack.c.l.b16 %v57
    %v811 = vunpack.c.l.b16 %v58
    %v812 = vpack.c.b16 %v811, %v810
    %v830 = vunpack.c.l.b16 %v780
    %v831 = vunpack.c.h.b16 %v780
    %v832 = vunpack.c.l.b16 %v781
    %v833 = vunpack.c.h.b16 %v781
    %v834 = vunpack.c.l.b16 %v782
    %v835 = vunpack.c.h.b16 %v782
    %v836 = vunpack.c.l.b16 %v783
    %v837 = vunpack.c.h.b16 %v783
    %v838 = vunpack.c.l.b16 %v784
    %v839 = vunpack.c.h.b16 %v784
    %v840 = vunpack.c.l.b16 %v785
    %v841 = vunpack.c.h.b16 %v785
    %v842 = vunpack.c.l.b16 %v786
    %v843 = vunpack.c.h.b16 %v786
    %v844 = vunpack.c.l.b16 %v787
    %v845 = vunpack.c.h.b16 %v787
    %v846 = vunpack.c.l.b16 %v788
    %v847 = vunpack.c.h.b16 %v788
    %v848 = vunpack.c.l.b16 %v789
    %v849 = vunpack.c.h.b16 %v789
    %v850 = vunpack.c.l.b16 %v790
    %v851 = vunpack.c.h.b16 %v790
    %v852 = vunpack.c.l.b16 %v791
    %v853 = vunpack.c.h.b16 %v791
    %v854 = vunpack.c.l.b16 %v792
    %v855 = vunpack.c.h.b16 %v792
    %v856 = vunpack.c.l.b16 %v793
    %v857 = vunpack.c.h.b16 %v793
    %v858 = vunpack.c.l.b16 %v794
    %v859 = vunpack.c.h.b16 %v794
    %v860 = vunpack.c.l.b16 %v795
    %v861 = vunpack.c.h.b16 %v795
    %v862 = vpack.c.b16 %v832, %v830
    %v863 = vpack.c.b16 %v833, %v831
    %v864 = vpack.c.b16 %v836, %v834
    %v865 = vpack.c.b16 %v837, %v835
    %v866 = vpack.c.b16 %v840, %v838
    %v867 = vpack.c.b16 %v841, %v839
    %v868 = vpack.c.b16 %v844, %v842
    %v869 = vpack.c.b16 %v845, %v843
    %v870 = vpack.c.b16 %v848, %v846
    %v871 = vpack.c.b16 %v849, %v847
    %v872 = vpack.c.b16 %v852, %v850
    %v873 = vpack.c.b16 %v853, %v851
    %v874 = vpack.c.b16 %v856, %v854
    %v875 = vpack.c.b16 %v857, %v855
    %v876 = vpack.c.b16 %v860, %v858
    %v877 = vpack.c.b16 %v861, %v859
    %894 = vmatprep.subr.bf16.mxu0 %v863
    %895 = vmatpush1.bf16.msra.mxu0 %v862
    %896 = vmatprep.subr.bf16.mxu0 %v865
    %897 = vmatpush1.bf16.msra.mxu0 %v864
    %898 = vmatprep.subr.bf16.mxu0 %v867
    %899 = vmatpush1.bf16.msra.mxu0 %v866
    %900 = vmatprep.subr.bf16.mxu0 %v869
    %901 = vmatpush1.bf16.msra.mxu0 %v868
    %902 = vmatprep.subr.bf16.mxu0 %v871
    %903 = vmatpush1.bf16.msra.mxu0 %v870
    %904 = vmatprep.subr.bf16.mxu0 %v873
    %905 = vmatpush1.bf16.msra.mxu0 %v872
    %906 = vmatprep.subr.bf16.mxu0 %v875
    %907 = vmatpush1.bf16.msra.mxu0 %v874
    %908 = vmatprep.subr.bf16.mxu0 %v877
    %909 = vmatpush1.bf16.msra.mxu0 %v876
    %910 = vmatprep.subr.bf16.mxu0 0
    %911 = vmatpush1.bf16.msra.mxu0 0
    %912 = vmatprep.subr.bf16.mxu0 0
    %913 = vmatpush1.bf16.msra.mxu0 0
    %914 = vmatprep.subr.bf16.mxu0 0
    %915 = vmatpush1.bf16.msra.mxu0 0
    %916 = vmatprep.subr.bf16.mxu0 0
    %917 = vmatpush1.bf16.msra.mxu0 0
    %918 = vmatprep.subr.bf16.mxu0 0
    %919 = vmatpush1.bf16.msra.mxu0 0
    %920 = vmatprep.subr.bf16.mxu0 0
    %921 = vmatpush1.bf16.msra.mxu0 0
    %922 = vmatprep.subr.bf16.mxu0 0
    %923 = vmatpush1.bf16.msra.mxu0 0
    %924 = vmatprep.subr.bf16.mxu0 0
    %925 = vmatpush1.bf16.msra.mxu0 0
    %926 = vmatprep.mubr.bf16.mxu0 0
    %927 = vmatmul.mubr.bf16.gmra.mrb[0].mxu0 %v812
    %v928 = vpop.f32.mrb[0].mxu0
    %v929 = vadd.f32 %v801, %v928
    %v930 = vpop.f32.mrb[0].mxu0
    %v931 = vadd.f32 %v805, %v930
    %v932 = vpop.f32.mrb[0].mxu0
    %v933 = vadd.f32 %v801, %v932
    %v934 = vpop.f32.mrb[0].mxu0
    %v935 = vadd.f32 %v805, %v934
    %936 = vdwg.mxu0
    %v937 = vmax.f32 %v929, 0.0
    %v938 = vmax.f32 %v931, 0.0
    %v939 = vmax.f32 %v933, 0.0
    %v940 = vmax.f32 %v935, 0.0
    %v941 = vpack.c.bf16 %v939, %v937
    %v942 = vpack.c.bf16 %v940, %v938
    %v943 = vld [vmem:[#allocation4 + $0x80] sm:$0xff]
    %v944 = vld [vmem:[#allocation4 + $0x88] sm:$0xff]
    %v945 = vld [vmem:[#allocation4 + $0x90] sm:$0xff]
    %v946 = vld [vmem:[#allocation4 + $0x98] sm:$0xff]
    %v947 = vld [vmem:[#allocation4 + $0xa0] sm:$0xff]
    %v948 = vld [vmem:[#allocation4 + $0xa8] sm:$0xff]
    %v949 = vld [vmem:[#allocation4 + $0xb0] sm:$0xff]
    %v950 = vld [vmem:[#allocation4 + $0xb8] sm:$0xff]
    %v951 = vld [vmem:[#allocation4 + $0xc0] sm:$0xff]
    %v952 = vld [vmem:[#allocation4 + $0xc8] sm:$0xff]
    %v953 = vld [vmem:[#allocation4 + $0xd0] sm:$0xff]
    %v954 = vld [vmem:[#allocation4 + $0xd8] sm:$0xff]
    %v955 = vld [vmem:[#allocation4 + $0xe0] sm:$0xff]
    %v956 = vld [vmem:[#allocation4 + $0xe8] sm:$0xff]
    %v957 = vld [vmem:[#allocation4 + $0xf0] sm:$0xff]
    %v958 = vld [vmem:[#allocation4 + $0xf8] sm:$0xff]
    %v959 = vld [vmem:[#allocation4 + $0x100] sm:$0xff]
    %v960 = vld [vmem:[#allocation4 + $0x108] sm:$0xff]
    %v961 = vld [vmem:[#allocation4 + $0x110] sm:$0xff]
    %v962 = vld [vmem:[#allocation4 + $0x118] sm:$0xff]
    %v963 = vld [vmem:[#allocation4 + $0x120] sm:$0xff]
    %v964 = vld [vmem:[#allocation4 + $0x128] sm:$0xff]
    %v965 = vld [vmem:[#allocation4 + $0x130] sm:$0xff]
    %v966 = vld [vmem:[#allocation4 + $0x138] sm:$0xff]
    %v967 = vld [vmem:[#allocation4 + $0x140] sm:$0xff]
    %v968 = vld [vmem:[#allocation4 + $0x148] sm:$0xff]
    %v969 = vld [vmem:[#allocation4 + $0x150] sm:$0xff]
    %v970 = vld [vmem:[#allocation4 + $0x158] sm:$0xff]
    %v971 = vld [vmem:[#allocation4 + $0x160] sm:$0xff]
    %v972 = vld [vmem:[#allocation4 + $0x168] sm:$0xff]
    %v973 = vld [vmem:[#allocation4 + $0x170] sm:$0xff]
    %v974 = vld [vmem:[#allocation4 + $0x178] sm:$0xff]
    %s975 = scalar_lea.vmem %s4, 1
    %v976 = vld [vmem:[%s975] ss:$8 sm:$0x3]
    %v978 = vlaneseq
    %v979 = vshrl.u32 %v978, 7
    %v980 = vsub.s32 0, %v979
    %v981 = vrot.slane %v976, %v980
    %v982 = vlaneseq
    %v983 = vshrl.u32 %v982, 7
    %v984 = vsub.s32 1, %v983
    %v985 = vrot.slane %v976, %v984
    %v1020 = vunpack.c.l.b16 %v943
    %v1021 = vunpack.c.h.b16 %v943
    %v1022 = vunpack.c.l.b16 %v944
    %v1023 = vunpack.c.h.b16 %v944
    %v1024 = vunpack.c.l.b16 %v945
    %v1025 = vunpack.c.h.b16 %v945
    %v1026 = vunpack.c.l.b16 %v946
    %v1027 = vunpack.c.h.b16 %v946
    %v1028 = vunpack.c.l.b16 %v947
    %v1029 = vunpack.c.h.b16 %v947
    %v1030 = vunpack.c.l.b16 %v948
    %v1031 = vunpack.c.h.b16 %v948
    %v1032 = vunpack.c.l.b16 %v949
    %v1033 = vunpack.c.h.b16 %v949
    %v1034 = vunpack.c.l.b16 %v950
    %v1035 = vunpack.c.h.b16 %v950
    %v1036 = vunpack.c.l.b16 %v951
    %v1037 = vunpack.c.h.b16 %v951
    %v1038 = vunpack.c.l.b16 %v952
    %v1039 = vunpack.c.h.b16 %v952
    %v1040 = vunpack.c.l.b16 %v953
    %v1041 = vunpack.c.h.b16 %v953
    %v1042 = vunpack.c.l.b16 %v954
    %v1043 = vunpack.c.h.b16 %v954
    %v1044 = vunpack.c.l.b16 %v955
    %v1045 = vunpack.c.h.b16 %v955
    %v1046 = vunpack.c.l.b16 %v956
    %v1047 = vunpack.c.h.b16 %v956
    %v1048 = vunpack.c.l.b16 %v957
    %v1049 = vunpack.c.h.b16 %v957
    %v1050 = vunpack.c.l.b16 %v958
    %v1051 = vunpack.c.h.b16 %v958
    %v1052 = vunpack.c.l.b16 %v959
    %v1053 = vunpack.c.h.b16 %v959
    %v1054 = vunpack.c.l.b16 %v960
    %v1055 = vunpack.c.h.b16 %v960
    %v1056 = vunpack.c.l.b16 %v961
    %v1057 = vunpack.c.h.b16 %v961
    %v1058 = vunpack.c.l.b16 %v962
    %v1059 = vunpack.c.h.b16 %v962
    %v1060 = vunpack.c.l.b16 %v963
    %v1061 = vunpack.c.h.b16 %v963
    %v1062 = vunpack.c.l.b16 %v964
    %v1063 = vunpack.c.h.b16 %v964
    %v1064 = vunpack.c.l.b16 %v965
    %v1065 = vunpack.c.h.b16 %v965
    %v1066 = vunpack.c.l.b16 %v966
    %v1067 = vunpack.c.h.b16 %v966
    %v1068 = vunpack.c.l.b16 %v967
    %v1069 = vunpack.c.h.b16 %v967
    %v1070 = vunpack.c.l.b16 %v968
    %v1071 = vunpack.c.h.b16 %v968
    %v1072 = vunpack.c.l.b16 %v969
    %v1073 = vunpack.c.h.b16 %v969
    %v1074 = vunpack.c.l.b16 %v970
    %v1075 = vunpack.c.h.b16 %v970
    %v1076 = vunpack.c.l.b16 %v971
    %v1077 = vunpack.c.h.b16 %v971
    %v1078 = vunpack.c.l.b16 %v972
    %v1079 = vunpack.c.h.b16 %v972
    %v1080 = vunpack.c.l.b16 %v973
    %v1081 = vunpack.c.h.b16 %v973
    %v1082 = vunpack.c.l.b16 %v974
    %v1083 = vunpack.c.h.b16 %v974
    %v1084 = vpack.c.b16 %v1022, %v1020
    %v1085 = vpack.c.b16 %v1023, %v1021
    %v1086 = vpack.c.b16 %v1026, %v1024
    %v1087 = vpack.c.b16 %v1027, %v1025
    %v1088 = vpack.c.b16 %v1030, %v1028
    %v1089 = vpack.c.b16 %v1031, %v1029
    %v1090 = vpack.c.b16 %v1034, %v1032
    %v1091 = vpack.c.b16 %v1035, %v1033
    %v1092 = vpack.c.b16 %v1038, %v1036
    %v1093 = vpack.c.b16 %v1039, %v1037
    %v1094 = vpack.c.b16 %v1042, %v1040
    %v1095 = vpack.c.b16 %v1043, %v1041
    %v1096 = vpack.c.b16 %v1046, %v1044
    %v1097 = vpack.c.b16 %v1047, %v1045
    %v1098 = vpack.c.b16 %v1050, %v1048
    %v1099 = vpack.c.b16 %v1051, %v1049
    %v1100 = vpack.c.b16 %v1054, %v1052
    %v1101 = vpack.c.b16 %v1055, %v1053
    %v1102 = vpack.c.b16 %v1058, %v1056
    %v1103 = vpack.c.b16 %v1059, %v1057
    %v1104 = vpack.c.b16 %v1062, %v1060
    %v1105 = vpack.c.b16 %v1063, %v1061
    %v1106 = vpack.c.b16 %v1066, %v1064
    %v1107 = vpack.c.b16 %v1067, %v1065
    %v1108 = vpack.c.b16 %v1070, %v1068
    %v1109 = vpack.c.b16 %v1071, %v1069
    %v1110 = vpack.c.b16 %v1074, %v1072
    %v1111 = vpack.c.b16 %v1075, %v1073
    %v1112 = vpack.c.b16 %v1078, %v1076
    %v1113 = vpack.c.b16 %v1079, %v1077
    %v1114 = vpack.c.b16 %v1082, %v1080
    %v1115 = vpack.c.b16 %v1083, %v1081
    %1148 = vmatprep.subr.bf16.mxu0 %v1085
    %1149 = vmatpush1.bf16.msra.mxu0 %v1084
    %1150 = vmatprep.subr.bf16.mxu0 %v1087
    %1151 = vmatpush1.bf16.msra.mxu0 %v1086
    %1152 = vmatprep.subr.bf16.mxu0 %v1089
    %1153 = vmatpush1.bf16.msra.mxu0 %v1088
    %1154 = vmatprep.subr.bf16.mxu0 %v1091
    %1155 = vmatpush1.bf16.msra.mxu0 %v1090
    %1156 = vmatprep.subr.bf16.mxu0 %v1093
    %1157 = vmatpush1.bf16.msra.mxu0 %v1092
    %1158 = vmatprep.subr.bf16.mxu0 %v1095
    %1159 = vmatpush1.bf16.msra.mxu0 %v1094
    %1160 = vmatprep.subr.bf16.mxu0 %v1097
    %1161 = vmatpush1.bf16.msra.mxu0 %v1096
    %1162 = vmatprep.subr.bf16.mxu0 %v1099
    %1163 = vmatpush1.bf16.msra.mxu0 %v1098
    %1164 = vmatprep.subr.bf16.mxu0 %v1101
    %1165 = vmatpush1.bf16.msra.mxu0 %v1100
    %1166 = vmatprep.subr.bf16.mxu0 %v1103
    %1167 = vmatpush1.bf16.msra.mxu0 %v1102
    %1168 = vmatprep.subr.bf16.mxu0 %v1105
    %1169 = vmatpush1.bf16.msra.mxu0 %v1104
    %1170 = vmatprep.subr.bf16.mxu0 %v1107
    %1171 = vmatpush1.bf16.msra.mxu0 %v1106
    %1172 = vmatprep.subr.bf16.mxu0 %v1109
    %1173 = vmatpush1.bf16.msra.mxu0 %v1108
    %1174 = vmatprep.subr.bf16.mxu0 %v1111
    %1175 = vmatpush1.bf16.msra.mxu0 %v1110
    %1176 = vmatprep.subr.bf16.mxu0 %v1113
    %1177 = vmatpush1.bf16.msra.mxu0 %v1112
    %1178 = vmatprep.subr.bf16.mxu0 %v1115
    %1179 = vmatpush1.bf16.msra.mxu0 %v1114
    %1180 = vmatprep.mubr.bf16.mxu0 %v942
    %1181 = vmatmul.mubr.bf16.gmra.mrb[0].mxu0 %v941
    %v1182 = vpop.f32.mrb[0].mxu0
    %v1183 = vadd.f32 %v981, %v1182
    %v1184 = vpop.f32.mrb[0].mxu0
    %v1185 = vadd.f32 %v985, %v1184
    %v1186 = vpop.f32.mrb[0].mxu0
    %v1187 = vadd.f32 %v981, %v1186
    %v1188 = vpop.f32.mrb[0].mxu0
    %v1189 = vadd.f32 %v985, %v1188
    %1190 = vdwg.mxu0
    %v1191 = vmax.f32 %v1183, 0.0
    %v1192 = vmax.f32 %v1185, 0.0
    %v1193 = vmax.f32 %v1187, 0.0
    %v1194 = vmax.f32 %v1189, 0.0
    %v1195 = vpack.c.bf16 %v1193, %v1191
    %v1196 = vpack.c.bf16 %v1194, %v1192
    %v1197 = vld [vmem:[#allocation4 + $0x180] sm:$0xff]
    %v1198 = vld [vmem:[#allocation4 + $0x188] sm:$0xff]
    %v1199 = vld [vmem:[#allocation4 + $0x190] sm:$0xff]
    %v1200 = vld [vmem:[#allocation4 + $0x198] sm:$0xff]
    %v1201 = vld [vmem:[#allocation4 + $0x1a0] sm:$0xff]
    %v1202 = vld [vmem:[#allocation4 + $0x1a8] sm:$0xff]
    %v1203 = vld [vmem:[#allocation4 + $0x1b0] sm:$0xff]
    %v1204 = vld [vmem:[#allocation4 + $0x1b8] sm:$0xff]
    %v1205 = vld [vmem:[#allocation4 + $0x1c0] sm:$0xff]
    %v1206 = vld [vmem:[#allocation4 + $0x1c8] sm:$0xff]
    %v1207 = vld [vmem:[#allocation4 + $0x1d0] sm:$0xff]
    %v1208 = vld [vmem:[#allocation4 + $0x1d8] sm:$0xff]
    %v1209 = vld [vmem:[#allocation4 + $0x1e0] sm:$0xff]
    %v1210 = vld [vmem:[#allocation4 + $0x1e8] sm:$0xff]
    %v1211 = vld [vmem:[#allocation4 + $0x1f0] sm:$0xff]
    %v1212 = vld [vmem:[#allocation4 + $0x1f8] sm:$0xff]
    %v1213 = vld [vmem:[#allocation4 + $0x200] sm:$0xff]
    %v1214 = vld [vmem:[#allocation4 + $0x208] sm:$0xff]
    %v1215 = vld [vmem:[#allocation4 + $0x210] sm:$0xff]
    %v1216 = vld [vmem:[#allocation4 + $0x218] sm:$0xff]
    %v1217 = vld [vmem:[#allocation4 + $0x220] sm:$0xff]
    %v1218 = vld [vmem:[#allocation4 + $0x228] sm:$0xff]
    %v1219 = vld [vmem:[#allocation4 + $0x230] sm:$0xff]
    %v1220 = vld [vmem:[#allocation4 + $0x238] sm:$0xff]
    %v1221 = vld [vmem:[#allocation4 + $0x240] sm:$0xff]
    %v1222 = vld [vmem:[#allocation4 + $0x248] sm:$0xff]
    %v1223 = vld [vmem:[#allocation4 + $0x250] sm:$0xff]
    %v1224 = vld [vmem:[#allocation4 + $0x258] sm:$0xff]
    %v1225 = vld [vmem:[#allocation4 + $0x260] sm:$0xff]
    %v1226 = vld [vmem:[#allocation4 + $0x268] sm:$0xff]
    %v1227 = vld [vmem:[#allocation4 + $0x270] sm:$0xff]
    %v1228 = vld [vmem:[#allocation4 + $0x278] sm:$0xff]
    %s1229 = scalar_lea.vmem %s4, 2
    %v1230 = vld [vmem:[%s1229] ss:$8 sm:$0x3]
    %v1232 = vlaneseq
    %v1233 = vshrl.u32 %v1232, 7
    %v1234 = vsub.s32 0, %v1233
    %v1235 = vrot.slane %v1230, %v1234
    %v1236 = vlaneseq
    %v1237 = vshrl.u32 %v1236, 7
    %v1238 = vsub.s32 1, %v1237
    %v1239 = vrot.slane %v1230, %v1238
    %v1274 = vunpack.c.l.b16 %v1197
    %v1275 = vunpack.c.h.b16 %v1197
    %v1276 = vunpack.c.l.b16 %v1198
    %v1277 = vunpack.c.h.b16 %v1198
    %v1278 = vunpack.c.l.b16 %v1199
    %v1279 = vunpack.c.h.b16 %v1199
    %v1280 = vunpack.c.l.b16 %v1200
    %v1281 = vunpack.c.h.b16 %v1200
    %v1282 = vunpack.c.l.b16 %v1201
    %v1283 = vunpack.c.h.b16 %v1201
    %v1284 = vunpack.c.l.b16 %v1202
    %v1285 = vunpack.c.h.b16 %v1202
    %v1286 = vunpack.c.l.b16 %v1203
    %v1287 = vunpack.c.h.b16 %v1203
    %v1288 = vunpack.c.l.b16 %v1204
    %v1289 = vunpack.c.h.b16 %v1204
    %v1290 = vunpack.c.l.b16 %v1205
    %v1291 = vunpack.c.h.b16 %v1205
    %v1292 = vunpack.c.l.b16 %v1206
    %v1293 = vunpack.c.h.b16 %v1206
    %v1294 = vunpack.c.l.b16 %v1207
    %v1295 = vunpack.c.h.b16 %v1207
    %v1296 = vunpack.c.l.b16 %v1208
    %v1297 = vunpack.c.h.b16 %v1208
    %v1298 = vunpack.c.l.b16 %v1209
    %v1299 = vunpack.c.h.b16 %v1209
    %v1300 = vunpack.c.l.b16 %v1210
    %v1301 = vunpack.c.h.b16 %v1210
    %v1302 = vunpack.c.l.b16 %v1211
    %v1303 = vunpack.c.h.b16 %v1211
    %v1304 = vunpack.c.l.b16 %v1212
    %v1305 = vunpack.c.h.b16 %v1212
    %v1306 = vunpack.c.l.b16 %v1213
    %v1307 = vunpack.c.h.b16 %v1213
    %v1308 = vunpack.c.l.b16 %v1214
    %v1309 = vunpack.c.h.b16 %v1214
    %v1310 = vunpack.c.l.b16 %v1215
    %v1311 = vunpack.c.h.b16 %v1215
    %v1312 = vunpack.c.l.b16 %v1216
    %v1313 = vunpack.c.h.b16 %v1216
    %v1314 = vunpack.c.l.b16 %v1217
    %v1315 = vunpack.c.h.b16 %v1217
    %v1316 = vunpack.c.l.b16 %v1218
    %v1317 = vunpack.c.h.b16 %v1218
    %v1318 = vunpack.c.l.b16 %v1219
    %v1319 = vunpack.c.h.b16 %v1219
    %v1320 = vunpack.c.l.b16 %v1220
    %v1321 = vunpack.c.h.b16 %v1220
    %v1322 = vunpack.c.l.b16 %v1221
    %v1323 = vunpack.c.h.b16 %v1221
    %v1324 = vunpack.c.l.b16 %v1222
    %v1325 = vunpack.c.h.b16 %v1222
    %v1326 = vunpack.c.l.b16 %v1223
    %v1327 = vunpack.c.h.b16 %v1223
    %v1328 = vunpack.c.l.b16 %v1224
    %v1329 = vunpack.c.h.b16 %v1224
    %v1330 = vunpack.c.l.b16 %v1225
    %v1331 = vunpack.c.h.b16 %v1225
    %v1332 = vunpack.c.l.b16 %v1226
    %v1333 = vunpack.c.h.b16 %v1226
    %v1334 = vunpack.c.l.b16 %v1227
    %v1335 = vunpack.c.h.b16 %v1227
    %v1336 = vunpack.c.l.b16 %v1228
    %v1337 = vunpack.c.h.b16 %v1228
    %v1338 = vpack.c.b16 %v1276, %v1274
    %v1339 = vpack.c.b16 %v1277, %v1275
    %v1340 = vpack.c.b16 %v1280, %v1278
    %v1341 = vpack.c.b16 %v1281, %v1279
    %v1342 = vpack.c.b16 %v1284, %v1282
    %v1343 = vpack.c.b16 %v1285, %v1283
    %v1344 = vpack.c.b16 %v1288, %v1286
    %v1345 = vpack.c.b16 %v1289, %v1287
    %v1346 = vpack.c.b16 %v1292, %v1290
    %v1347 = vpack.c.b16 %v1293, %v1291
    %v1348 = vpack.c.b16 %v1296, %v1294
    %v1349 = vpack.c.b16 %v1297, %v1295
    %v1350 = vpack.c.b16 %v1300, %v1298
    %v1351 = vpack.c.b16 %v1301, %v1299
    %v1352 = vpack.c.b16 %v1304, %v1302
    %v1353 = vpack.c.b16 %v1305, %v1303
    %v1354 = vpack.c.b16 %v1308, %v1306
    %v1355 = vpack.c.b16 %v1309, %v1307
    %v1356 = vpack.c.b16 %v1312, %v1310
    %v1357 = vpack.c.b16 %v1313, %v1311
    %v1358 = vpack.c.b16 %v1316, %v1314
    %v1359 = vpack.c.b16 %v1317, %v1315
    %v1360 = vpack.c.b16 %v1320, %v1318
    %v1361 = vpack.c.b16 %v1321, %v1319
    %v1362 = vpack.c.b16 %v1324, %v1322
    %v1363 = vpack.c.b16 %v1325, %v1323
    %v1364 = vpack.c.b16 %v1328, %v1326
    %v1365 = vpack.c.b16 %v1329, %v1327
    %v1366 = vpack.c.b16 %v1332, %v1330
    %v1367 = vpack.c.b16 %v1333, %v1331
    %v1368 = vpack.c.b16 %v1336, %v1334
    %v1369 = vpack.c.b16 %v1337, %v1335
    %1402 = vmatprep.subr.bf16.mxu0 %v1339
    %1403 = vmatpush1.bf16.msra.mxu0 %v1338
    %1404 = vmatprep.subr.bf16.mxu0 %v1341
    %1405 = vmatpush1.bf16.msra.mxu0 %v1340
    %1406 = vmatprep.subr.bf16.mxu0 %v1343
    %1407 = vmatpush1.bf16.msra.mxu0 %v1342
    %1408 = vmatprep.subr.bf16.mxu0 %v1345
    %1409 = vmatpush1.bf16.msra.mxu0 %v1344
    %1410 = vmatprep.subr.bf16.mxu0 %v1347
    %1411 = vmatpush1.bf16.msra.mxu0 %v1346
    %1412 = vmatprep.subr.bf16.mxu0 %v1349
    %1413 = vmatpush1.bf16.msra.mxu0 %v1348
    %1414 = vmatprep.subr.bf16.mxu0 %v1351
    %1415 = vmatpush1.bf16.msra.mxu0 %v1350
    %1416 = vmatprep.subr.bf16.mxu0 %v1353
    %1417 = vmatpush1.bf16.msra.mxu0 %v1352
    %1418 = vmatprep.subr.bf16.mxu0 %v1355
    %1419 = vmatpush1.bf16.msra.mxu0 %v1354
    %1420 = vmatprep.subr.bf16.mxu0 %v1357
    %1421 = vmatpush1.bf16.msra.mxu0 %v1356
    %1422 = vmatprep.subr.bf16.mxu0 %v1359
    %1423 = vmatpush1.bf16.msra.mxu0 %v1358
    %1424 = vmatprep.subr.bf16.mxu0 %v1361
    %1425 = vmatpush1.bf16.msra.mxu0 %v1360
    %1426 = vmatprep.subr.bf16.mxu0 %v1363
    %1427 = vmatpush1.bf16.msra.mxu0 %v1362
    %1428 = vmatprep.subr.bf16.mxu0 %v1365
    %1429 = vmatpush1.bf16.msra.mxu0 %v1364
    %1430 = vmatprep.subr.bf16.mxu0 %v1367
    %1431 = vmatpush1.bf16.msra.mxu0 %v1366
    %1432 = vmatprep.subr.bf16.mxu0 %v1369
    %1433 = vmatpush1.bf16.msra.mxu0 %v1368
    %1434 = vmatprep.mubr.bf16.mxu0 %v942
    %1435 = vmatmul.mubr.bf16.gmra.mrb[0].mxu0 %v941
    %v1436 = vpop.f32.mrb[0].mxu0
    %v1437 = vadd.f32 %v1235, %v1436
    %v1438 = vpop.f32.mrb[0].mxu0
    %v1439 = vadd.f32 %v1239, %v1438
    %v1440 = vpop.f32.mrb[0].mxu0
    %v1441 = vadd.f32 %v1235, %v1440
    %v1442 = vpop.f32.mrb[0].mxu0
    %v1443 = vadd.f32 %v1239, %v1442
    %1444 = vdwg.mxu0
    %v1445 = vmax.f32 %v1437, 0.0
    %v1446 = vmax.f32 %v1439, 0.0
    %v1447 = vmax.f32 %v1441, 0.0
    %v1448 = vmax.f32 %v1443, 0.0
    %v1449 = vpack.c.bf16 %v1447, %v1445
    %v1450 = vpack.c.bf16 %v1448, %v1446
    %v1451 = vld [vmem:[#allocation2 + $0x200] sm:$0xf]
    %v1452 = vld [vmem:[#allocation2 + $0x204] sm:$0xf]
    %v1453 = vld [vmem:[#allocation2 + $0x208] sm:$0xf]
    %v1454 = vld [vmem:[#allocation2 + $0x20c] sm:$0xf]
    %v1455 = vld [vmem:[#allocation2 + $0x210] sm:$0xf]
    %v1456 = vld [vmem:[#allocation2 + $0x214] sm:$0xf]
    %v1457 = vld [vmem:[#allocation2 + $0x218] sm:$0xf]
    %v1458 = vld [vmem:[#allocation2 + $0x21c] sm:$0xf]
    %v1459 = vld [vmem:[#allocation2 + $0x220] sm:$0xf]
    %v1460 = vld [vmem:[#allocation2 + $0x224] sm:$0xf]
    %v1461 = vld [vmem:[#allocation2 + $0x228] sm:$0xf]
    %v1462 = vld [vmem:[#allocation2 + $0x22c] sm:$0xf]
    %v1463 = vld [vmem:[#allocation2 + $0x230] sm:$0xf]
    %v1464 = vld [vmem:[#allocation2 + $0x234] sm:$0xf]
    %v1465 = vld [vmem:[#allocation2 + $0x238] sm:$0xf]
    %v1466 = vld [vmem:[#allocation2 + $0x23c] sm:$0xf]
    %v1467 = vld [vmem:[#allocation2 + $0x240] sm:$0xf]
    %v1468 = vld [vmem:[#allocation2 + $0x244] sm:$0xf]
    %v1469 = vld [vmem:[#allocation2 + $0x248] sm:$0xf]
    %v1470 = vld [vmem:[#allocation2 + $0x24c] sm:$0xf]
    %v1471 = vld [vmem:[#allocation2 + $0x250] sm:$0xf]
    %v1472 = vld [vmem:[#allocation2 + $0x254] sm:$0xf]
    %v1473 = vld [vmem:[#allocation2 + $0x258] sm:$0xf]
    %v1474 = vld [vmem:[#allocation2 + $0x25c] sm:$0xf]
    %v1475 = vld [vmem:[#allocation2 + $0x260] sm:$0xf]
    %v1476 = vld [vmem:[#allocation2 + $0x264] sm:$0xf]
    %v1477 = vld [vmem:[#allocation2 + $0x268] sm:$0xf]
    %v1478 = vld [vmem:[#allocation2 + $0x26c] sm:$0xf]
    %v1479 = vld [vmem:[#allocation2 + $0x270] sm:$0xf]
    %v1480 = vld [vmem:[#allocation2 + $0x274] sm:$0xf]
    %v1481 = vld [vmem:[#allocation2 + $0x278] sm:$0xf]
    %v1482 = vld [vmem:[#allocation2 + $0x27c] sm:$0xf]
    %v1483 = vld [vmem:[#allocation2 + $0x280] sm:$0xf]
    %v1484 = vld [vmem:[#allocation2 + $0x284] sm:$0xf]
    %v1485 = vld [vmem:[#allocation2 + $0x288] sm:$0xf]
    %v1486 = vld [vmem:[#allocation2 + $0x28c] sm:$0xf]
    %v1487 = vld [vmem:[#allocation2 + $0x290] sm:$0xf]
    %v1488 = vld [vmem:[#allocation2 + $0x294] sm:$0xf]
    %v1489 = vld [vmem:[#allocation2 + $0x298] sm:$0xf]
    %v1490 = vld [vmem:[#allocation2 + $0x29c] sm:$0xf]
    %v1491 = vld [vmem:[#allocation2 + $0x2a0] sm:$0xf]
    %v1492 = vld [vmem:[#allocation2 + $0x2a4] sm:$0xf]
    %v1493 = vld [vmem:[#allocation2 + $0x2a8] sm:$0xf]
    %v1494 = vld [vmem:[#allocation2 + $0x2ac] sm:$0xf]
    %v1495 = vld [vmem:[#allocation2 + $0x2b0] sm:$0xf]
    %v1496 = vld [vmem:[#allocation2 + $0x2b4] sm:$0xf]
    %v1497 = vld [vmem:[#allocation2 + $0x2b8] sm:$0xf]
    %v1498 = vld [vmem:[#allocation2 + $0x2bc] sm:$0xf]
    %v1499 = vld [vmem:[#allocation2 + $0x2c0] sm:$0xf]
    %v1500 = vld [vmem:[#allocation2 + $0x2c4] sm:$0xf]
    %v1501 = vld [vmem:[#allocation2 + $0x2c8] sm:$0xf]
    %v1502 = vld [vmem:[#allocation2 + $0x2cc] sm:$0xf]
    %v1503 = vld [vmem:[#allocation2 + $0x2d0] sm:$0xf]
    %v1504 = vld [vmem:[#allocation2 + $0x2d4] sm:$0xf]
    %v1505 = vld [vmem:[#allocation2 + $0x2d8] sm:$0xf]
    %v1506 = vld [vmem:[#allocation2 + $0x2dc] sm:$0xf]
    %v1507 = vld [vmem:[#allocation2 + $0x2e0] sm:$0xf]
    %v1508 = vld [vmem:[#allocation2 + $0x2e4] sm:$0xf]
    %v1509 = vld [vmem:[#allocation2 + $0x2e8] sm:$0xf]
    %v1510 = vld [vmem:[#allocation2 + $0x2ec] sm:$0xf]
    %v1511 = vld [vmem:[#allocation2 + $0x2f0] sm:$0xf]
    %v1512 = vld [vmem:[#allocation2 + $0x2f4] sm:$0xf]
    %v1513 = vld [vmem:[#allocation2 + $0x2f8] sm:$0xf]
    %v1514 = vld [vmem:[#allocation2 + $0x2fc] sm:$0xf]
    %v1547 = vunpack.c.l.b16 %v1483
    %v1548 = vunpack.c.l.b16 %v1484
    %v1549 = vunpack.c.l.b16 %v1485
    %v1550 = vunpack.c.l.b16 %v1486
    %v1551 = vunpack.c.l.b16 %v1487
    %v1552 = vunpack.c.l.b16 %v1488
    %v1553 = vunpack.c.l.b16 %v1489
    %v1554 = vunpack.c.l.b16 %v1490
    %v1555 = vunpack.c.l.b16 %v1491
    %v1556 = vunpack.c.l.b16 %v1492
    %v1557 = vunpack.c.l.b16 %v1493
    %v1558 = vunpack.c.l.b16 %v1494
    %v1559 = vunpack.c.l.b16 %v1495
    %v1560 = vunpack.c.l.b16 %v1496
    %v1561 = vunpack.c.l.b16 %v1497
    %v1562 = vunpack.c.l.b16 %v1498
    %v1563 = vunpack.c.l.b16 %v1499
    %v1564 = vunpack.c.l.b16 %v1500
    %v1565 = vunpack.c.l.b16 %v1501
    %v1566 = vunpack.c.l.b16 %v1502
    %v1567 = vunpack.c.l.b16 %v1503
    %v1568 = vunpack.c.l.b16 %v1504
    %v1569 = vunpack.c.l.b16 %v1505
    %v1570 = vunpack.c.l.b16 %v1506
    %v1571 = vunpack.c.l.b16 %v1507
    %v1572 = vunpack.c.l.b16 %v1508
    %v1573 = vunpack.c.l.b16 %v1509
    %v1574 = vunpack.c.l.b16 %v1510
    %v1575 = vunpack.c.l.b16 %v1511
    %v1576 = vunpack.c.l.b16 %v1512
    %v1577 = vunpack.c.l.b16 %v1513
    %v1578 = vunpack.c.l.b16 %v1514
    %v1579 = vpack.c.b16 %v1548, %v1547
    %v1580 = vpack.c.b16 %v1550, %v1549
    %v1581 = vpack.c.b16 %v1552, %v1551
    %v1582 = vpack.c.b16 %v1554, %v1553
    %v1583 = vpack.c.b16 %v1556, %v1555
    %v1584 = vpack.c.b16 %v1558, %v1557
    %v1585 = vpack.c.b16 %v1560, %v1559
    %v1586 = vpack.c.b16 %v1562, %v1561
    %v1587 = vpack.c.b16 %v1564, %v1563
    %v1588 = vpack.c.b16 %v1566, %v1565
    %v1589 = vpack.c.b16 %v1568, %v1567
    %v1590 = vpack.c.b16 %v1570, %v1569
    %v1591 = vpack.c.b16 %v1572, %v1571
    %v1592 = vpack.c.b16 %v1574, %v1573
    %v1593 = vpack.c.b16 %v1576, %v1575
    %v1594 = vpack.c.b16 %v1578, %v1577
    %1611 = vmatprep.subr.bf16.mxu0 0
    %1612 = vmatpush1.bf16.msra.mxu0 %v1579
    %1613 = vmatprep.subr.bf16.mxu0 0
    %1614 = vmatpush1.bf16.msra.mxu0 %v1580
    %1615 = vmatprep.subr.bf16.mxu0 0
    %1616 = vmatpush1.bf16.msra.mxu0 %v1581
    %1617 = vmatprep.subr.bf16.mxu0 0
    %1618 = vmatpush1.bf16.msra.mxu0 %v1582
    %1619 = vmatprep.subr.bf16.mxu0 0
    %1620 = vmatpush1.bf16.msra.mxu0 %v1583
    %1621 = vmatprep.subr.bf16.mxu0 0
    %1622 = vmatpush1.bf16.msra.mxu0 %v1584
    %1623 = vmatprep.subr.bf16.mxu0 0
    %1624 = vmatpush1.bf16.msra.mxu0 %v1585
    %1625 = vmatprep.subr.bf16.mxu0 0
    %1626 = vmatpush1.bf16.msra.mxu0 %v1586
    %1627 = vmatprep.subr.bf16.mxu0 0
    %1628 = vmatpush1.bf16.msra.mxu0 %v1587
    %1629 = vmatprep.subr.bf16.mxu0 0
    %1630 = vmatpush1.bf16.msra.mxu0 %v1588
    %1631 = vmatprep.subr.bf16.mxu0 0
    %1632 = vmatpush1.bf16.msra.mxu0 %v1589
    %1633 = vmatprep.subr.bf16.mxu0 0
    %1634 = vmatpush1.bf16.msra.mxu0 %v1590
    %1635 = vmatprep.subr.bf16.mxu0 0
    %1636 = vmatpush1.bf16.msra.mxu0 %v1591
    %1637 = vmatprep.subr.bf16.mxu0 0
    %1638 = vmatpush1.bf16.msra.mxu0 %v1592
    %1639 = vmatprep.subr.bf16.mxu0 0
    %1640 = vmatpush1.bf16.msra.mxu0 %v1593
    %1641 = vmatprep.subr.bf16.mxu0 0
    %1642 = vmatpush1.bf16.msra.mxu0 %v1594
    %1643 = vmatprep.mubr.bf16.mxu0 %v1450
    %1644 = vmatmul.mubr.bf16.gmra.mrb[0].mxu0 %v1449
    %v1645 = vpop.f32.mrb[0].mxu0
    %v1646 = vadd.f32 0.0, %v1645
    %v1647 = vpop.f32.mrb[0].mxu0
    %v1648 = vpop.f32.mrb[0].mxu0
    %v1649 = vadd.f32 0.0, %v1648
    %v1650 = vpop.f32.mrb[0].mxu0
    %1651 = vdwg.mxu0
    %v1684 = vunpack.c.l.b16 %v1451
    %v1685 = vunpack.c.l.b16 %v1452
    %v1686 = vunpack.c.l.b16 %v1453
    %v1687 = vunpack.c.l.b16 %v1454
    %v1688 = vunpack.c.l.b16 %v1455
    %v1689 = vunpack.c.l.b16 %v1456
    %v1690 = vunpack.c.l.b16 %v1457
    %v1691 = vunpack.c.l.b16 %v1458
    %v1692 = vunpack.c.l.b16 %v1459
    %v1693 = vunpack.c.l.b16 %v1460
    %v1694 = vunpack.c.l.b16 %v1461
    %v1695 = vunpack.c.l.b16 %v1462
    %v1696 = vunpack.c.l.b16 %v1463
    %v1697 = vunpack.c.l.b16 %v1464
    %v1698 = vunpack.c.l.b16 %v1465
    %v1699 = vunpack.c.l.b16 %v1466
    %v1700 = vunpack.c.l.b16 %v1467
    %v1701 = vunpack.c.l.b16 %v1468
    %v1702 = vunpack.c.l.b16 %v1469
    %v1703 = vunpack.c.l.b16 %v1470
    %v1704 = vunpack.c.l.b16 %v1471
    %v1705 = vunpack.c.l.b16 %v1472
    %v1706 = vunpack.c.l.b16 %v1473
    %v1707 = vunpack.c.l.b16 %v1474
    %v1708 = vunpack.c.l.b16 %v1475
    %v1709 = vunpack.c.l.b16 %v1476
    %v1710 = vunpack.c.l.b16 %v1477
    %v1711 = vunpack.c.l.b16 %v1478
    %v1712 = vunpack.c.l.b16 %v1479
    %v1713 = vunpack.c.l.b16 %v1480
    %v1714 = vunpack.c.l.b16 %v1481
    %v1715 = vunpack.c.l.b16 %v1482
    %v1716 = vpack.c.b16 %v1685, %v1684
    %v1717 = vpack.c.b16 %v1687, %v1686
    %v1718 = vpack.c.b16 %v1689, %v1688
    %v1719 = vpack.c.b16 %v1691, %v1690
    %v1720 = vpack.c.b16 %v1693, %v1692
    %v1721 = vpack.c.b16 %v1695, %v1694
    %v1722 = vpack.c.b16 %v1697, %v1696
    %v1723 = vpack.c.b16 %v1699, %v1698
    %v1724 = vpack.c.b16 %v1701, %v1700
    %v1725 = vpack.c.b16 %v1703, %v1702
    %v1726 = vpack.c.b16 %v1705, %v1704
    %v1727 = vpack.c.b16 %v1707, %v1706
    %v1728 = vpack.c.b16 %v1709, %v1708
    %v1729 = vpack.c.b16 %v1711, %v1710
    %v1730 = vpack.c.b16 %v1713, %v1712
    %v1731 = vpack.c.b16 %v1715, %v1714
    %1748 = vmatprep.subr.bf16.mxu0 0
    %1749 = vmatpush1.bf16.msra.mxu0 %v1716
    %1750 = vmatprep.subr.bf16.mxu0 0
    %1751 = vmatpush1.bf16.msra.mxu0 %v1717
    %1752 = vmatprep.subr.bf16.mxu0 0
    %1753 = vmatpush1.bf16.msra.mxu0 %v1718
    %1754 = vmatprep.subr.bf16.mxu0 0
    %1755 = vmatpush1.bf16.msra.mxu0 %v1719
    %1756 = vmatprep.subr.bf16.mxu0 0
    %1757 = vmatpush1.bf16.msra.mxu0 %v1720
    %1758 = vmatprep.subr.bf16.mxu0 0
    %1759 = vmatpush1.bf16.msra.mxu0 %v1721
    %1760 = vmatprep.subr.bf16.mxu0 0
    %1761 = vmatpush1.bf16.msra.mxu0 %v1722
    %1762 = vmatprep.subr.bf16.mxu0 0
    %1763 = vmatpush1.bf16.msra.mxu0 %v1723
    %1764 = vmatprep.subr.bf16.mxu0 0
    %1765 = vmatpush1.bf16.msra.mxu0 %v1724
    %1766 = vmatprep.subr.bf16.mxu0 0
    %1767 = vmatpush1.bf16.msra.mxu0 %v1725
    %1768 = vmatprep.subr.bf16.mxu0 0
    %1769 = vmatpush1.bf16.msra.mxu0 %v1726
    %1770 = vmatprep.subr.bf16.mxu0 0
    %1771 = vmatpush1.bf16.msra.mxu0 %v1727
    %1772 = vmatprep.subr.bf16.mxu0 0
    %1773 = vmatpush1.bf16.msra.mxu0 %v1728
    %1774 = vmatprep.subr.bf16.mxu0 0
    %1775 = vmatpush1.bf16.msra.mxu0 %v1729
    %1776 = vmatprep.subr.bf16.mxu0 0
    %1777 = vmatpush1.bf16.msra.mxu0 %v1730
    %1778 = vmatprep.subr.bf16.mxu0 0
    %1779 = vmatpush1.bf16.msra.mxu0 %v1731
    %1780 = vmatprep.mubr.bf16.mxu0 %v1196
    %1781 = vmatmul.mubr.bf16.gmra.mrb[0].mxu0 %v1195
    %v1782 = vpop.f32.mrb[0].mxu0
    %v1783 = vadd.f32 %v1646, %v1782
    %v1784 = vpop.f32.mrb[0].mxu0
    %v1785 = vpop.f32.mrb[0].mxu0
    %v1786 = vadd.f32 %v1649, %v1785
    %v1787 = vpop.f32.mrb[0].mxu0
    %1788 = vdwg.mxu0
    %v1789 = vld [vmem:[%s3 + $0x1] sm:$0x1]
    %v1790 = vlaneseq
    %v1791 = vshrl.u32 %v1790, 7
    %v1792 = vsub.s32 0, %v1791
    %v1793 = vrot.slane %v1789, %v1792
    %v1794 = vadd.f32 %v1783, %v1793
    %v1795 = vadd.f32 %v1786, %v1793
    %v1796 = vpack.c.bf16 %v777, %v774
    %v1797 = vpack.c.bf16 %v1795, %v1794
    %v1798 = vld [vmem:[#allocation4 + $0x280] sm:$0xff]
    %v1799 = vld [vmem:[#allocation4 + $0x288] sm:$0xff]
    %v1800 = vld [vmem:[#allocation4 + $0x290] sm:$0xff]
    %v1801 = vld [vmem:[#allocation4 + $0x298] sm:$0xff]
    %v1802 = vld [vmem:[#allocation4 + $0x2a0] sm:$0xff]
    %v1803 = vld [vmem:[#allocation4 + $0x2a8] sm:$0xff]
    %v1804 = vld [vmem:[#allocation4 + $0x2b0] sm:$0xff]
    %v1805 = vld [vmem:[#allocation4 + $0x2b8] sm:$0xff]
    %v1806 = vld [vmem:[#allocation4 + $0x2c0] sm:$0xff]
    %v1807 = vld [vmem:[#allocation4 + $0x2c8] sm:$0xff]
    %v1808 = vld [vmem:[#allocation4 + $0x2d0] sm:$0xff]
    %v1809 = vld [vmem:[#allocation4 + $0x2d8] sm:$0xff]
    %v1810 = vld [vmem:[#allocation4 + $0x2e0] sm:$0xff]
    %v1811 = vld [vmem:[#allocation4 + $0x2e8] sm:$0xff]
    %v1812 = vld [vmem:[#allocation4 + $0x2f0] sm:$0xff]
    %v1813 = vld [vmem:[#allocation4 + $0x2f8] sm:$0xff]
    %v1830 = vunpack.c.l.b16 %v1798
    %v1831 = vunpack.c.h.b16 %v1798
    %v1832 = vunpack.c.l.b16 %v1799
    %v1833 = vunpack.c.h.b16 %v1799
    %v1834 = vunpack.c.l.b16 %v1800
    %v1835 = vunpack.c.h.b16 %v1800
    %v1836 = vunpack.c.l.b16 %v1801
    %v1837 = vunpack.c.h.b16 %v1801
    %v1838 = vunpack.c.l.b16 %v1802
    %v1839 = vunpack.c.h.b16 %v1802
    %v1840 = vunpack.c.l.b16 %v1803
    %v1841 = vunpack.c.h.b16 %v1803
    %v1842 = vunpack.c.l.b16 %v1804
    %v1843 = vunpack.c.h.b16 %v1804
    %v1844 = vunpack.c.l.b16 %v1805
    %v1845 = vunpack.c.h.b16 %v1805
    %v1846 = vunpack.c.l.b16 %v1806
    %v1847 = vunpack.c.h.b16 %v1806
    %v1848 = vunpack.c.l.b16 %v1807
    %v1849 = vunpack.c.h.b16 %v1807
    %v1850 = vunpack.c.l.b16 %v1808
    %v1851 = vunpack.c.h.b16 %v1808
    %v1852 = vunpack.c.l.b16 %v1809
    %v1853 = vunpack.c.h.b16 %v1809
    %v1854 = vunpack.c.l.b16 %v1810
    %v1855 = vunpack.c.h.b16 %v1810
    %v1856 = vunpack.c.l.b16 %v1811
    %v1857 = vunpack.c.h.b16 %v1811
    %v1858 = vunpack.c.l.b16 %v1812
    %v1859 = vunpack.c.h.b16 %v1812
    %v1860 = vunpack.c.l.b16 %v1813
    %v1861 = vunpack.c.h.b16 %v1813
    %v1862 = vpack.c.b16 %v1832, %v1830
    %v1863 = vpack.c.b16 %v1833, %v1831
    %v1864 = vpack.c.b16 %v1836, %v1834
    %v1865 = vpack.c.b16 %v1837, %v1835
    %v1866 = vpack.c.b16 %v1840, %v1838
    %v1867 = vpack.c.b16 %v1841, %v1839
    %v1868 = vpack.c.b16 %v1844, %v1842
    %v1869 = vpack.c.b16 %v1845, %v1843
    %v1870 = vpack.c.b16 %v1848, %v1846
    %v1871 = vpack.c.b16 %v1849, %v1847
    %v1872 = vpack.c.b16 %v1852, %v1850
    %v1873 = vpack.c.b16 %v1853, %v1851
    %v1874 = vpack.c.b16 %v1856, %v1854
    %v1875 = vpack.c.b16 %v1857, %v1855
    %v1876 = vpack.c.b16 %v1860, %v1858
    %v1877 = vpack.c.b16 %v1861, %v1859
    %1894 = vmatprep.subr.bf16.mxu0 %v1863
    %1895 = vmatpush1.bf16.msra.mxu0 %v1862
    %1896 = vmatprep.subr.bf16.mxu0 %v1865
    %1897 = vmatpush1.bf16.msra.mxu0 %v1864
    %1898 = vmatprep.subr.bf16.mxu0 %v1867
    %1899 = vmatpush1.bf16.msra.mxu0 %v1866
    %1900 = vmatprep.subr.bf16.mxu0 %v1869
    %1901 = vmatpush1.bf16.msra.mxu0 %v1868
    %1902 = vmatprep.subr.bf16.mxu0 %v1871
    %1903 = vmatpush1.bf16.msra.mxu0 %v1870
    %1904 = vmatprep.subr.bf16.mxu0 %v1873
    %1905 = vmatpush1.bf16.msra.mxu0 %v1872
    %1906 = vmatprep.subr.bf16.mxu0 %v1875
    %1907 = vmatpush1.bf16.msra.mxu0 %v1874
    %1908 = vmatprep.subr.bf16.mxu0 %v1877
    %1909 = vmatpush1.bf16.msra.mxu0 %v1876
    %1910 = vmatprep.subr.bf16.mxu0 0
    %1911 = vmatpush1.bf16.msra.mxu0 0
    %1912 = vmatprep.subr.bf16.mxu0 0
    %1913 = vmatpush1.bf16.msra.mxu0 0
    %1914 = vmatprep.subr.bf16.mxu0 0
    %1915 = vmatpush1.bf16.msra.mxu0 0
    %1916 = vmatprep.subr.bf16.mxu0 0
    %1917 = vmatpush1.bf16.msra.mxu0 0
    %1918 = vmatprep.subr.bf16.mxu0 0
    %1919 = vmatpush1.bf16.msra.mxu0 0
    %1920 = vmatprep.subr.bf16.mxu0 0
    %1921 = vmatpush1.bf16.msra.mxu0 0
    %1922 = vmatprep.subr.bf16.mxu0 0
    %1923 = vmatpush1.bf16.msra.mxu0 0
    %1924 = vmatprep.subr.bf16.mxu0 0
    %1925 = vmatpush1.bf16.msra.mxu0 0
    %1926 = vmatprep.mubr.bf16.mxu0 0
    %1927 = vmatmul.mubr.bf16.gmra.mrb[0].mxu0 %v1796
    %v1928 = vpop.f32.mrb[0].mxu0
    %v1929 = vadd.f32 0.0, %v1928
    %v1930 = vpop.f32.mrb[0].mxu0
    %v1931 = vpop.f32.mrb[0].mxu0
    %v1932 = vadd.f32 0.0, %v1931
    %v1933 = vpop.f32.mrb[0].mxu0
    %1934 = vmatprep.mubr.bf16.mxu0 0
    %1935 = vmatmul.mubr.bf16.gmra.mrb[0].mxu0 %v1797
    %v1936 = vpop.f32.mrb[0].mxu0
    %v1937 = vpop.f32.mrb[0].mxu0
    %v1938 = vadd.f32 0.0, %v1937
    %v1939 = vpop.f32.mrb[0].mxu0
    %v1940 = vpop.f32.mrb[0].mxu0
    %v1941 = vadd.f32 0.0, %v1940
    %1942 = vdwg.mxu0
    %v1943 = vld [vmem:[%s3 + $0x2] sm:$0x1]
    %v1944 = vlaneseq
    %v1945 = vshrl.u32 %v1944, 7
    %v1946 = vsub.s32 0, %v1945
    %v1947 = vrot.slane %v1943, %v1946
    %v1948 = vadd.f32 %v1929, %v1947
    %v1949 = vadd.f32 %v1932, %v1947
    %v1950 = vld [vmem:[%s3 + $0x3] sm:$0x1]
    %v1951 = vlaneseq
    %v1952 = vshrl.u32 %v1951, 7
    %v1953 = vsub.s32 0, %v1952
    %v1954 = vrot.slane %v1950, %v1953
    %v1955 = vadd.f32 %v1938, %v1954
    %v1956 = vadd.f32 %v1941, %v1954
    %v1957 = vpack.c.bf16 %v1949, %v1948
    %v1958 = vpack.c.bf16 %v1956, %v1955
    %v1959 = vld [vmem:[#allocation4 + $0x300] sm:$0xff]
    %v1960 = vld [vmem:[#allocation4 + $0x308] sm:$0xff]
    %v1961 = vld [vmem:[#allocation4 + $0x310] sm:$0xff]
    %v1962 = vld [vmem:[#allocation4 + $0x318] sm:$0xff]
    %v1963 = vld [vmem:[#allocation4 + $0x320] sm:$0xff]
    %v1964 = vld [vmem:[#allocation4 + $0x328] sm:$0xff]
    %v1965 = vld [vmem:[#allocation4 + $0x330] sm:$0xff]
    %v1966 = vld [vmem:[#allocation4 + $0x338] sm:$0xff]
    %v1967 = vld [vmem:[#allocation4 + $0x340] sm:$0xff]
    %v1968 = vld [vmem:[#allocation4 + $0x348] sm:$0xff]
    %v1969 = vld [vmem:[#allocation4 + $0x350] sm:$0xff]
    %v1970 = vld [vmem:[#allocation4 + $0x358] sm:$0xff]
    %v1971 = vld [vmem:[#allocation4 + $0x360] sm:$0xff]
    %v1972 = vld [vmem:[#allocation4 + $0x368] sm:$0xff]
    %v1973 = vld [vmem:[#allocation4 + $0x370] sm:$0xff]
    %v1974 = vld [vmem:[#allocation4 + $0x378] sm:$0xff]
    %v1991 = vunpack.c.l.b16 %v1959
    %v1992 = vunpack.c.h.b16 %v1959
    %v1993 = vunpack.c.l.b16 %v1960
    %v1994 = vunpack.c.h.b16 %v1960
    %v1995 = vunpack.c.l.b16 %v1961
    %v1996 = vunpack.c.h.b16 %v1961
    %v1997 = vunpack.c.l.b16 %v1962
    %v1998 = vunpack.c.h.b16 %v1962
    %v1999 = vunpack.c.l.b16 %v1963
    %v2000 = vunpack.c.h.b16 %v1963
    %v2001 = vunpack.c.l.b16 %v1964
    %v2002 = vunpack.c.h.b16 %v1964
    %v2003 = vunpack.c.l.b16 %v1965
    %v2004 = vunpack.c.h.b16 %v1965
    %v2005 = vunpack.c.l.b16 %v1966
    %v2006 = vunpack.c.h.b16 %v1966
    %v2007 = vunpack.c.l.b16 %v1967
    %v2008 = vunpack.c.h.b16 %v1967
    %v2009 = vunpack.c.l.b16 %v1968
    %v2010 = vunpack.c.h.b16 %v1968
    %v2011 = vunpack.c.l.b16 %v1969
    %v2012 = vunpack.c.h.b16 %v1969
    %v2013 = vunpack.c.l.b16 %v1970
    %v2014 = vunpack.c.h.b16 %v1970
    %v2015 = vunpack.c.l.b16 %v1971
    %v2016 = vunpack.c.h.b16 %v1971
    %v2017 = vunpack.c.l.b16 %v1972
    %v2018 = vunpack.c.h.b16 %v1972
    %v2019 = vunpack.c.l.b16 %v1973
    %v2020 = vunpack.c.h.b16 %v1973
    %v2021 = vunpack.c.l.b16 %v1974
    %v2022 = vunpack.c.h.b16 %v1974
    %v2023 = vpack.c.b16 %v1993, %v1991
    %v2024 = vpack.c.b16 %v1994, %v1992
    %v2025 = vpack.c.b16 %v1997, %v1995
    %v2026 = vpack.c.b16 %v1998, %v1996
    %v2027 = vpack.c.b16 %v2001, %v1999
    %v2028 = vpack.c.b16 %v2002, %v2000
    %v2029 = vpack.c.b16 %v2005, %v2003
    %v2030 = vpack.c.b16 %v2006, %v2004
    %v2031 = vpack.c.b16 %v2009, %v2007
    %v2032 = vpack.c.b16 %v2010, %v2008
    %v2033 = vpack.c.b16 %v2013, %v2011
    %v2034 = vpack.c.b16 %v2014, %v2012
    %v2035 = vpack.c.b16 %v2017, %v2015
    %v2036 = vpack.c.b16 %v2018, %v2016
    %v2037 = vpack.c.b16 %v2021, %v2019
    %v2038 = vpack.c.b16 %v2022, %v2020
    %2055 = vmatprep.subr.bf16.mxu0 %v2024
    %2056 = vmatpush1.bf16.msra.mxu0 %v2023
    %2057 = vmatprep.subr.bf16.mxu0 %v2026
    %2058 = vmatpush1.bf16.msra.mxu0 %v2025
    %2059 = vmatprep.subr.bf16.mxu0 %v2028
    %2060 = vmatpush1.bf16.msra.mxu0 %v2027
    %2061 = vmatprep.subr.bf16.mxu0 %v2030
    %2062 = vmatpush1.bf16.msra.mxu0 %v2029
    %2063 = vmatprep.subr.bf16.mxu0 %v2032
    %2064 = vmatpush1.bf16.msra.mxu0 %v2031
    %2065 = vmatprep.subr.bf16.mxu0 %v2034
    %2066 = vmatpush1.bf16.msra.mxu0 %v2033
    %2067 = vmatprep.subr.bf16.mxu0 %v2036
    %2068 = vmatpush1.bf16.msra.mxu0 %v2035
    %2069 = vmatprep.subr.bf16.mxu0 %v2038
    %2070 = vmatpush1.bf16.msra.mxu0 %v2037
    %2071 = vmatprep.subr.bf16.mxu0 0
    %2072 = vmatpush1.bf16.msra.mxu0 0
    %2073 = vmatprep.subr.bf16.mxu0 0
    %2074 = vmatpush1.bf16.msra.mxu0 0
    %2075 = vmatprep.subr.bf16.mxu0 0
    %2076 = vmatpush1.bf16.msra.mxu0 0
    %2077 = vmatprep.subr.bf16.mxu0 0
    %2078 = vmatpush1.bf16.msra.mxu0 0
    %2079 = vmatprep.subr.bf16.mxu0 0
    %2080 = vmatpush1.bf16.msra.mxu0 0
    %2081 = vmatprep.subr.bf16.mxu0 0
    %2082 = vmatpush1.bf16.msra.mxu0 0
    %2083 = vmatprep.subr.bf16.mxu0 0
    %2084 = vmatpush1.bf16.msra.mxu0 0
    %2085 = vmatprep.subr.bf16.mxu0 0
    %2086 = vmatpush1.bf16.msra.mxu0 0
    %2087 = vmatprep.mubr.bf16.mxu0 0
    %2088 = vmatmul.mubr.bf16.gmra.mrb[0].mxu0 %v1957
    %v2089 = vpop.f32.mrb[0].mxu0
    %v2090 = vadd.f32 0.0, %v2089
    %v2091 = vpop.f32.mrb[0].mxu0
    %v2092 = vpop.f32.mrb[0].mxu0
    %v2093 = vadd.f32 0.0, %v2092
    %v2094 = vpop.f32.mrb[0].mxu0
    %2095 = vmatprep.mubr.bf16.mxu0 0
    %2096 = vmatmul.mubr.bf16.gmra.mrb[0].mxu0 %v1958
    %v2097 = vpop.f32.mrb[0].mxu0
    %v2098 = vpop.f32.mrb[0].mxu0
    %v2099 = vadd.f32 0.0, %v2098
    %v2100 = vpop.f32.mrb[0].mxu0
    %v2101 = vpop.f32.mrb[0].mxu0
    %v2102 = vadd.f32 0.0, %v2101
    %2103 = vdwg.mxu0
    %v2104 = vld [vmem:[%s3 + $0x4] sm:$0x1]
    %v2105 = vlaneseq
    %v2106 = vshrl.u32 %v2105, 7
    %v2107 = vsub.s32 0, %v2106
    %v2108 = vrot.slane %v2104, %v2107
    %v2109 = vadd.f32 %v2090, %v2108
    %v2110 = vadd.f32 %v2093, %v2108
    %2111 = vadd.xlane.f32.xlu0 %v2109
    %v2112 = vpop.xlane.xlu0 %2111
    %2113 = vadd.xlane.f32.xlu0 %v2110
    %v2114 = vpop.xlane.xlu0 %2113
    %v2115 = vrcp.pop 128.0
    %v2116 = vmul.f32 %v2112, %v2115
    %v2117 = vmul.f32 %v2114, %v2115
    %v2118 = vmul.f32 %v2109, %v2109
    %v2119 = vmul.f32 %v2110, %v2110
    %2120 = vadd.xlane.f32.xlu0 %v2118
    %v2121 = vpop.xlane.xlu0 %2120
    %2122 = vadd.xlane.f32.xlu0 %v2119
    %v2123 = vpop.xlane.xlu0 %2122
    %v2124 = vmul.f32 %v2121, %v2115
    %v2125 = vmul.f32 %v2123, %v2115
    %v2126 = vmul.f32 %v2116, %v2116
    %v2127 = vmul.f32 %v2117, %v2117
    %v2128 = vsub.f32 %v2124, %v2126
    %v2129 = vsub.f32 %v2125, %v2127
    %v2130 = vmax.f32 %v2128, 0.0
    %v2131 = vmax.f32 %v2129, 0.0
    %v2132 = vsub.f32 %v2109, %v2116
    %v2133 = vsub.f32 %v2110, %v2117
    %v2134 = vadd.f32 %v2130, 1e-05
    %v2135 = vadd.f32 %v2131, 1e-05
    %v2136 = vrsqrt.pop %v2134
    %v2137 = vrsqrt.pop %v2135
    %v2138 = vmul.f32 %v2132, %v2136
    %v2139 = vmul.f32 %v2133, %v2137
    %v2140 = vld [vmem:[%s3 + $0x5] sm:$0x1]
    %v2141 = vlaneseq
    %v2142 = vshrl.u32 %v2141, 7
    %v2143 = vsub.s32 0, %v2142
    %v2144 = vrot.slane %v2140, %v2143
    %v2145 = vmul.f32 %v2138, %v2144
    %v2146 = vmul.f32 %v2139, %v2144
    %v2147 = vld [vmem:[%s3 + $0x6] sm:$0x1]
    %v2148 = vlaneseq
    %v2149 = vshrl.u32 %v2148, 7
    %v2150 = vsub.s32 0, %v2149
    %v2151 = vrot.slane %v2147, %v2150
    %v2152 = vadd.f32 %v2145, %v2151
    %v2153 = vadd.f32 %v2146, %v2151
    %v2154 = vld [vmem:[%s3 + $0x7] sm:$0x1]
    %v2155 = vlaneseq
    %v2156 = vshrl.u32 %v2155, 7
    %v2157 = vsub.s32 0, %v2156
    %v2158 = vrot.slane %v2154, %v2157
    %v2159 = vadd.f32 %v2099, %v2158
    %v2160 = vadd.f32 %v2102, %v2158
    %2161 = vadd.xlane.f32.xlu0 %v2159
    %v2162 = vpop.xlane.xlu0 %2161
    %2163 = vadd.xlane.f32.xlu0 %v2160
    %v2164 = vpop.xlane.xlu0 %2163
    %v2165 = vmul.f32 %v2162, %v2115
    %v2166 = vmul.f32 %v2164, %v2115
    %v2167 = vmul.f32 %v2159, %v2159
    %v2168 = vmul.f32 %v2160, %v2160
    %2169 = vadd.xlane.f32.xlu0 %v2167
    %v2170 = vpop.xlane.xlu0 %2169
    %2171 = vadd.xlane.f32.xlu0 %v2168
    %v2172 = vpop.xlane.xlu0 %2171
    %v2173 = vmul.f32 %v2170, %v2115
    %v2174 = vmul.f32 %v2172, %v2115
    %v2175 = vmul.f32 %v2165, %v2165
    %v2176 = vmul.f32 %v2166, %v2166
    %v2177 = vsub.f32 %v2173, %v2175
    %v2178 = vsub.f32 %v2174, %v2176
    %v2179 = vmax.f32 %v2177, 0.0
    %v2180 = vmax.f32 %v2178, 0.0
    %v2181 = vsub.f32 %v2159, %v2165
    %v2182 = vsub.f32 %v2160, %v2166
    %v2183 = vadd.f32 %v2179, 1e-05
    %v2184 = vadd.f32 %v2180, 1e-05
    %v2185 = vrsqrt.pop %v2183
    %v2186 = vrsqrt.pop %v2184
    %v2187 = vmul.f32 %v2181, %v2185
    %v2188 = vmul.f32 %v2182, %v2186
    %v2189 = vld [vmem:[%s3 + $0x8] sm:$0x1]
    %v2190 = vlaneseq
    %v2191 = vshrl.u32 %v2190, 7
    %v2192 = vsub.s32 0, %v2191
    %v2193 = vrot.slane %v2189, %v2192
    %v2194 = vmul.f32 %v2187, %v2193
    %v2195 = vmul.f32 %v2188, %v2193
    %v2196 = vld [vmem:[%s3 + $0x9] sm:$0x1]
    %v2197 = vlaneseq
    %v2198 = vshrl.u32 %v2197, 7
    %v2199 = vsub.s32 0, %v2198
    %v2200 = vrot.slane %v2196, %v2199
    %v2201 = vadd.f32 %v2194, %v2200
    %v2202 = vadd.f32 %v2195, %v2200
    %v2203 = vpack.c.bf16 %v2153, %v2152
    %v2204 = vpack.c.bf16 %v2202, %v2201
    %v2205 = vld [vmem:[#allocation4 + $0x380] sm:$0xff]
    %v2206 = vld [vmem:[#allocation4 + $0x388] sm:$0xff]
    %v2207 = vld [vmem:[#allocation4 + $0x390] sm:$0xff]
    %v2208 = vld [vmem:[#allocation4 + $0x398] sm:$0xff]
    %v2209 = vld [vmem:[#allocation4 + $0x3a0] sm:$0xff]
    %v2210 = vld [vmem:[#allocation4 + $0x3a8] sm:$0xff]
    %v2211 = vld [vmem:[#allocation4 + $0x3b0] sm:$0xff]
    %v2212 = vld [vmem:[#allocation4 + $0x3b8] sm:$0xff]
    %v2213 = vld [vmem:[#allocation4 + $0x3c0] sm:$0xff]
    %v2214 = vld [vmem:[#allocation4 + $0x3c8] sm:$0xff]
    %v2215 = vld [vmem:[#allocation4 + $0x3d0] sm:$0xff]
    %v2216 = vld [vmem:[#allocation4 + $0x3d8] sm:$0xff]
    %v2217 = vld [vmem:[#allocation4 + $0x3e0] sm:$0xff]
    %v2218 = vld [vmem:[#allocation4 + $0x3e8] sm:$0xff]
    %v2219 = vld [vmem:[#allocation4 + $0x3f0] sm:$0xff]
    %v2220 = vld [vmem:[#allocation4 + $0x3f8] sm:$0xff]
    %v2237 = vunpack.c.l.b16 %v2205
    %v2238 = vunpack.c.h.b16 %v2205
    %v2239 = vunpack.c.l.b16 %v2206
    %v2240 = vunpack.c.h.b16 %v2206
    %v2241 = vunpack.c.l.b16 %v2207
    %v2242 = vunpack.c.h.b16 %v2207
    %v2243 = vunpack.c.l.b16 %v2208
    %v2244 = vunpack.c.h.b16 %v2208
    %v2245 = vunpack.c.l.b16 %v2209
    %v2246 = vunpack.c.h.b16 %v2209
    %v2247 = vunpack.c.l.b16 %v2210
    %v2248 = vunpack.c.h.b16 %v2210
    %v2249 = vunpack.c.l.b16 %v2211
    %v2250 = vunpack.c.h.b16 %v2211
    %v2251 = vunpack.c.l.b16 %v2212
    %v2252 = vunpack.c.h.b16 %v2212
    %v2253 = vunpack.c.l.b16 %v2213
    %v2254 = vunpack.c.h.b16 %v2213
    %v2255 = vunpack.c.l.b16 %v2214
    %v2256 = vunpack.c.h.b16 %v2214
    %v2257 = vunpack.c.l.b16 %v2215
    %v2258 = vunpack.c.h.b16 %v2215
    %v2259 = vunpack.c.l.b16 %v2216
    %v2260 = vunpack.c.h.b16 %v2216
    %v2261 = vunpack.c.l.b16 %v2217
    %v2262 = vunpack.c.h.b16 %v2217
    %v2263 = vunpack.c.l.b16 %v2218
    %v2264 = vunpack.c.h.b16 %v2218
    %v2265 = vunpack.c.l.b16 %v2219
    %v2266 = vunpack.c.h.b16 %v2219
    %v2267 = vunpack.c.l.b16 %v2220
    %v2268 = vunpack.c.h.b16 %v2220
    %v2269 = vpack.c.b16 %v2239, %v2237
    %v2270 = vpack.c.b16 %v2240, %v2238
    %v2271 = vpack.c.b16 %v2243, %v2241
    %v2272 = vpack.c.b16 %v2244, %v2242
    %v2273 = vpack.c.b16 %v2247, %v2245
    %v2274 = vpack.c.b16 %v2248, %v2246
    %v2275 = vpack.c.b16 %v2251, %v2249
    %v2276 = vpack.c.b16 %v2252, %v2250
    %v2277 = vpack.c.b16 %v2255, %v2253
    %v2278 = vpack.c.b16 %v2256, %v2254
    %v2279 = vpack.c.b16 %v2259, %v2257
    %v2280 = vpack.c.b16 %v2260, %v2258
    %v2281 = vpack.c.b16 %v2263, %v2261
    %v2282 = vpack.c.b16 %v2264, %v2262
    %v2283 = vpack.c.b16 %v2267, %v2265
    %v2284 = vpack.c.b16 %v2268, %v2266
    %2301 = vmatprep.subr.bf16.mxu0 %v2270
    %2302 = vmatpush1.bf16.msra.mxu0 %v2269
    %2303 = vmatprep.subr.bf16.mxu0 %v2272
    %2304 = vmatpush1.bf16.msra.mxu0 %v2271
    %2305 = vmatprep.subr.bf16.mxu0 %v2274
    %2306 = vmatpush1.bf16.msra.mxu0 %v2273
    %2307 = vmatprep.subr.bf16.mxu0 %v2276
    %2308 = vmatpush1.bf16.msra.mxu0 %v2275
    %2309 = vmatprep.subr.bf16.mxu0 %v2278
    %2310 = vmatpush1.bf16.msra.mxu0 %v2277
    %2311 = vmatprep.subr.bf16.mxu0 %v2280
    %2312 = vmatpush1.bf16.msra.mxu0 %v2279
    %2313 = vmatprep.subr.bf16.mxu0 %v2282
    %2314 = vmatpush1.bf16.msra.mxu0 %v2281
    %2315 = vmatprep.subr.bf16.mxu0 %v2284
    %2316 = vmatpush1.bf16.msra.mxu0 %v2283
    %2317 = vmatprep.subr.bf16.mxu0 0
    %2318 = vmatpush1.bf16.msra.mxu0 0
    %2319 = vmatprep.subr.bf16.mxu0 0
    %2320 = vmatpush1.bf16.msra.mxu0 0
    %2321 = vmatprep.subr.bf16.mxu0 0
    %2322 = vmatpush1.bf16.msra.mxu0 0
    %2323 = vmatprep.subr.bf16.mxu0 0
    %2324 = vmatpush1.bf16.msra.mxu0 0
    %2325 = vmatprep.subr.bf16.mxu0 0
    %2326 = vmatpush1.bf16.msra.mxu0 0
    %2327 = vmatprep.subr.bf16.mxu0 0
    %2328 = vmatpush1.bf16.msra.mxu0 0
    %2329 = vmatprep.subr.bf16.mxu0 0
    %2330 = vmatpush1.bf16.msra.mxu0 0
    %2331 = vmatprep.subr.bf16.mxu0 0
    %2332 = vmatpush1.bf16.msra.mxu0 0
    %2333 = vmatprep.mubr.bf16.mxu0 0
    %2334 = vmatmul.mubr.bf16.gmra.mrb[0].mxu0 %v2203
    %v2335 = vpop.f32.mrb[0].mxu0
    %v2336 = vadd.f32 0.0, %v2335
    %v2337 = vpop.f32.mrb[0].mxu0
    %v2338 = vpop.f32.mrb[0].mxu0
    %v2339 = vadd.f32 0.0, %v2338
    %v2340 = vpop.f32.mrb[0].mxu0
    %2341 = vmatprep.mubr.bf16.mxu0 0
    %2342 = vmatmul.mubr.bf16.gmra.mrb[0].mxu0 %v2204
    %v2343 = vpop.f32.mrb[0].mxu0
    %v2344 = vpop.f32.mrb[0].mxu0
    %v2345 = vadd.f32 0.0, %v2344
    %v2346 = vpop.f32.mrb[0].mxu0
    %v2347 = vpop.f32.mrb[0].mxu0
    %v2348 = vadd.f32 0.0, %v2347
    %2349 = vdwg.mxu0
    %v2350 = vld [vmem:[%s3 + $0xa] sm:$0x1]
    %v2351 = vlaneseq
    %v2352 = vshrl.u32 %v2351, 7
    %v2353 = vsub.s32 0, %v2352
    %v2354 = vrot.slane %v2350, %v2353
    %v2355 = vadd.f32 %v2336, %v2354
    %v2356 = vadd.f32 %v2339, %v2354
    %v2357 = vxor.u32 %v2355, 2147483648
    %v2358 = vxor.u32 %v2356, 2147483648
    %v2359 = vmul.f32 %v2357, 1.442695
    %v2360 = vpow.pop %v2359
    %v2361 = vmul.f32 %v2358, 1.442695
    %v2362 = vpow.pop %v2361
    %v2363 = vadd.f32 %v2360, 1.0
    %v2364 = vadd.f32 %v2362, 1.0
    %v2365 = vrcp.pop %v2363
    %v2366 = vmul.f32 1.0, %v2365
    %v2367 = vrcp.pop %v2364
    %v2368 = vmul.f32 1.0, %v2367
    %v2369 = vld [vmem:[%s3 + $0xb] sm:$0x1]
    %v2370 = vlaneseq
    %v2371 = vshrl.u32 %v2370, 7
    %v2372 = vsub.s32 0, %v2371
    %v2373 = vrot.slane %v2369, %v2372
    %v2374 = vadd.f32 %v2345, %v2373
    %v2375 = vadd.f32 %v2348, %v2373
    %v2376 = vxor.u32 %v2374, 2147483648
    %v2377 = vxor.u32 %v2375, 2147483648
    %v2378 = vmul.f32 %v2376, 1.442695
    %v2379 = vpow.pop %v2378
    %v2380 = vmul.f32 %v2377, 1.442695
    %v2381 = vpow.pop %v2380
    %v2382 = vadd.f32 %v2379, 1.0
    %v2383 = vadd.f32 %v2381, 1.0
    %v2384 = vrcp.pop %v2382
    %v2385 = vmul.f32 1.0, %v2384
    %v2386 = vrcp.pop %v2383
    %v2387 = vmul.f32 1.0, %v2386
    %v2388 = vmul.f32 %v2366, %v2152
    %v2389 = vmul.f32 %v2368, %v2153
    %v2390 = vpack.c.bf16 %v2389, %v2388
    %v2391 = vmul.f32 %v2385, %v2201
    %v2392 = vmul.f32 %v2387, %v2202
    %v2393 = vpack.c.bf16 %v2392, %v2391
    %v2394 = vld [vmem:[#allocation2 + $0x300] sm:$0xf]
    %v2395 = vld [vmem:[#allocation2 + $0x304] sm:$0xf]
    %v2396 = vld [vmem:[#allocation2 + $0x308] sm:$0xf]
    %v2397 = vld [vmem:[#allocation2 + $0x30c] sm:$0xf]
    %v2398 = vld [vmem:[#allocation2 + $0x310] sm:$0xf]
    %v2399 = vld [vmem:[#allocation2 + $0x314] sm:$0xf]
    %v2400 = vld [vmem:[#allocation2 + $0x318] sm:$0xf]
    %v2401 = vld [vmem:[#allocation2 + $0x31c] sm:$0xf]
    %v2402 = vld [vmem:[#allocation2 + $0x320] sm:$0xf]
    %v2403 = vld [vmem:[#allocation2 + $0x324] sm:$0xf]
    %v2404 = vld [vmem:[#allocation2 + $0x328] sm:$0xf]
    %v2405 = vld [vmem:[#allocation2 + $0x32c] sm:$0xf]
    %v2406 = vld [vmem:[#allocation2 + $0x330] sm:$0xf]
    %v2407 = vld [vmem:[#allocation2 + $0x334] sm:$0xf]
    %v2408 = vld [vmem:[#allocation2 + $0x338] sm:$0xf]
    %v2409 = vld [vmem:[#allocation2 + $0x33c] sm:$0xf]
    %v2410 = vld [vmem:[#allocation2 + $0x340] sm:$0xf]
    %v2411 = vld [vmem:[#allocation2 + $0x344] sm:$0xf]
    %v2412 = vld [vmem:[#allocation2 + $0x348] sm:$0xf]
    %v2413 = vld [vmem:[#allocation2 + $0x34c] sm:$0xf]
    %v2414 = vld [vmem:[#allocation2 + $0x350] sm:$0xf]
    %v2415 = vld [vmem:[#allocation2 + $0x354] sm:$0xf]
    %v2416 = vld [vmem:[#allocation2 + $0x358] sm:$0xf]
    %v2417 = vld [vmem:[#allocation2 + $0x35c] sm:$0xf]
    %v2418 = vld [vmem:[#allocation2 + $0x360] sm:$0xf]
    %v2419 = vld [vmem:[#allocation2 + $0x364] sm:$0xf]
    %v2420 = vld [vmem:[#allocation2 + $0x368] sm:$0xf]
    %v2421 = vld [vmem:[#allocation2 + $0x36c] sm:$0xf]
    %v2422 = vld [vmem:[#allocation2 + $0x370] sm:$0xf]
    %v2423 = vld [vmem:[#allocation2 + $0x374] sm:$0xf]
    %v2424 = vld [vmem:[#allocation2 + $0x378] sm:$0xf]
    %v2425 = vld [vmem:[#allocation2 + $0x37c] sm:$0xf]
    %v2426 = vld [vmem:[%s3 + $0xc] sm:$0x1]
    %v2427 = vlaneseq
    %v2428 = vshrl.u32 %v2427, 7
    %v2429 = vsub.s32 0, %v2428
    %v2430 = vrot.slane %v2426, %v2429
    %v2463 = vunpack.c.l.b16 %v2394
    %v2464 = vunpack.c.l.b16 %v2395
    %v2465 = vunpack.c.l.b16 %v2396
    %v2466 = vunpack.c.l.b16 %v2397
    %v2467 = vunpack.c.l.b16 %v2398
    %v2468 = vunpack.c.l.b16 %v2399
    %v2469 = vunpack.c.l.b16 %v2400
    %v2470 = vunpack.c.l.b16 %v2401
    %v2471 = vunpack.c.l.b16 %v2402
    %v2472 = vunpack.c.l.b16 %v2403
    %v2473 = vunpack.c.l.b16 %v2404
    %v2474 = vunpack.c.l.b16 %v2405
    %v2475 = vunpack.c.l.b16 %v2406
    %v2476 = vunpack.c.l.b16 %v2407
    %v2477 = vunpack.c.l.b16 %v2408
    %v2478 = vunpack.c.l.b16 %v2409
    %v2479 = vunpack.c.l.b16 %v2410
    %v2480 = vunpack.c.l.b16 %v2411
    %v2481 = vunpack.c.l.b16 %v2412
    %v2482 = vunpack.c.l.b16 %v2413
    %v2483 = vunpack.c.l.b16 %v2414
    %v2484 = vunpack.c.l.b16 %v2415
    %v2485 = vunpack.c.l.b16 %v2416
    %v2486 = vunpack.c.l.b16 %v2417
    %v2487 = vunpack.c.l.b16 %v2418
    %v2488 = vunpack.c.l.b16 %v2419
    %v2489 = vunpack.c.l.b16 %v2420
    %v2490 = vunpack.c.l.b16 %v2421
    %v2491 = vunpack.c.l.b16 %v2422
    %v2492 = vunpack.c.l.b16 %v2423
    %v2493 = vunpack.c.l.b16 %v2424
    %v2494 = vunpack.c.l.b16 %v2425
    %v2495 = vpack.c.b16 %v2464, %v2463
    %v2496 = vpack.c.b16 %v2466, %v2465
    %v2497 = vpack.c.b16 %v2468, %v2467
    %v2498 = vpack.c.b16 %v2470, %v2469
    %v2499 = vpack.c.b16 %v2472, %v2471
    %v2500 = vpack.c.b16 %v2474, %v2473
    %v2501 = vpack.c.b16 %v2476, %v2475
    %v2502 = vpack.c.b16 %v2478, %v2477
    %v2503 = vpack.c.b16 %v2480, %v2479
    %v2504 = vpack.c.b16 %v2482, %v2481
    %v2505 = vpack.c.b16 %v2484, %v2483
    %v2506 = vpack.c.b16 %v2486, %v2485
    %v2507 = vpack.c.b16 %v2488, %v2487
    %v2508 = vpack.c.b16 %v2490, %v2489
    %v2509 = vpack.c.b16 %v2492, %v2491
    %v2510 = vpack.c.b16 %v2494, %v2493
    %2527 = vmatprep.subr.bf16.mxu0 0
    %2528 = vmatpush1.bf16.msra.mxu0 %v2495
    %2529 = vmatprep.subr.bf16.mxu0 0
    %2530 = vmatpush1.bf16.msra.mxu0 %v2496
    %2531 = vmatprep.subr.bf16.mxu0 0
    %2532 = vmatpush1.bf16.msra.mxu0 %v2497
    %2533 = vmatprep.subr.bf16.mxu0 0
    %2534 = vmatpush1.bf16.msra.mxu0 %v2498
    %2535 = vmatprep.subr.bf16.mxu0 0
    %2536 = vmatpush1.bf16.msra.mxu0 %v2499
    %2537 = vmatprep.subr.bf16.mxu0 0
    %2538 = vmatpush1.bf16.msra.mxu0 %v2500
    %2539 = vmatprep.subr.bf16.mxu0 0
    %2540 = vmatpush1.bf16.msra.mxu0 %v2501
    %2541 = vmatprep.subr.bf16.mxu0 0
    %2542 = vmatpush1.bf16.msra.mxu0 %v2502
    %2543 = vmatprep.subr.bf16.mxu0 0
    %2544 = vmatpush1.bf16.msra.mxu0 %v2503
    %2545 = vmatprep.subr.bf16.mxu0 0
    %2546 = vmatpush1.bf16.msra.mxu0 %v2504
    %2547 = vmatprep.subr.bf16.mxu0 0
    %2548 = vmatpush1.bf16.msra.mxu0 %v2505
    %2549 = vmatprep.subr.bf16.mxu0 0
    %2550 = vmatpush1.bf16.msra.mxu0 %v2506
    %2551 = vmatprep.subr.bf16.mxu0 0
    %2552 = vmatpush1.bf16.msra.mxu0 %v2507
    %2553 = vmatprep.subr.bf16.mxu0 0
    %2554 = vmatpush1.bf16.msra.mxu0 %v2508
    %2555 = vmatprep.subr.bf16.mxu0 0
    %2556 = vmatpush1.bf16.msra.mxu0 %v2509
    %2557 = vmatprep.subr.bf16.mxu0 0
    %2558 = vmatpush1.bf16.msra.mxu0 %v2510
    %2559 = vmatprep.mubr.bf16.mxu0 %v2393
    %2560 = vmatmul.mubr.bf16.gmra.mrb[0].mxu0 %v2390
    %v2561 = vpop.f32.mrb[0].mxu0
    %v2562 = vadd.f32 %v2430, %v2561
    %v2563 = vpop.f32.mrb[0].mxu0
    %v2564 = vpop.f32.mrb[0].mxu0
    %v2565 = vadd.f32 %v2430, %v2564
    %v2566 = vpop.f32.mrb[0].mxu0
    %2567 = vdwg.mxu0
    %v2568 = vmax.f32 %v2562, 0.0
    %v2569 = vmax.f32 %v2565, 0.0
    %v2570 = vpack.c.bf16 %v2569, %v2568
    %v2571 = vld [vmem:[#allocation2 + $0x380] sm:$0xf]
    %v2572 = vld [vmem:[#allocation2 + $0x384] sm:$0xf]
    %v2573 = vld [vmem:[#allocation2 + $0x388] sm:$0xf]
    %v2574 = vld [vmem:[#allocation2 + $0x38c] sm:$0xf]
    %v2575 = vld [vmem:[#allocation2 + $0x390] sm:$0xf]
    %v2576 = vld [vmem:[#allocation2 + $0x394] sm:$0xf]
    %v2577 = vld [vmem:[#allocation2 + $0x398] sm:$0xf]
    %v2578 = vld [vmem:[#allocation2 + $0x39c] sm:$0xf]
    %v2579 = vld [vmem:[#allocation2 + $0x3a0] sm:$0xf]
    %v2580 = vld [vmem:[#allocation2 + $0x3a4] sm:$0xf]
    %v2581 = vld [vmem:[#allocation2 + $0x3a8] sm:$0xf]
    %v2582 = vld [vmem:[#allocation2 + $0x3ac] sm:$0xf]
    %v2583 = vld [vmem:[#allocation2 + $0x3b0] sm:$0xf]
    %v2584 = vld [vmem:[#allocation2 + $0x3b4] sm:$0xf]
    %v2585 = vld [vmem:[#allocation2 + $0x3b8] sm:$0xf]
    %v2586 = vld [vmem:[#allocation2 + $0x3bc] sm:$0xf]
    %v2587 = vld [vmem:[%s3 + $0xd] sm:$0x1]
    %v2588 = vlaneseq
    %v2589 = vshrl.u32 %v2588, 7
    %v2590 = vsub.s32 0, %v2589
    %v2591 = vrot.slane %v2587, %v2590
    %v2608 = vunpack.c.l.b16 %v2571
    %v2609 = vunpack.c.l.b16 %v2572
    %v2610 = vunpack.c.l.b16 %v2573
    %v2611 = vunpack.c.l.b16 %v2574
    %v2612 = vunpack.c.l.b16 %v2575
    %v2613 = vunpack.c.l.b16 %v2576
    %v2614 = vunpack.c.l.b16 %v2577
    %v2615 = vunpack.c.l.b16 %v2578
    %v2616 = vunpack.c.l.b16 %v2579
    %v2617 = vunpack.c.l.b16 %v2580
    %v2618 = vunpack.c.l.b16 %v2581
    %v2619 = vunpack.c.l.b16 %v2582
    %v2620 = vunpack.c.l.b16 %v2583
    %v2621 = vunpack.c.l.b16 %v2584
    %v2622 = vunpack.c.l.b16 %v2585
    %v2623 = vunpack.c.l.b16 %v2586
    %v2624 = vpack.c.b16 %v2609, %v2608
    %v2625 = vpack.c.b16 %v2611, %v2610
    %v2626 = vpack.c.b16 %v2613, %v2612
    %v2627 = vpack.c.b16 %v2615, %v2614
    %v2628 = vpack.c.b16 %v2617, %v2616
    %v2629 = vpack.c.b16 %v2619, %v2618
    %v2630 = vpack.c.b16 %v2621, %v2620
    %v2631 = vpack.c.b16 %v2623, %v2622
    %2640 = vmatprep.subr.bf16.mxu0 0
    %2641 = vmatpush1.bf16.msra.mxu0 %v2624
    %2642 = vmatprep.subr.bf16.mxu0 0
    %2643 = vmatpush1.bf16.msra.mxu0 %v2625
    %2644 = vmatprep.subr.bf16.mxu0 0
    %2645 = vmatpush1.bf16.msra.mxu0 %v2626
    %2646 = vmatprep.subr.bf16.mxu0 0
    %2647 = vmatpush1.bf16.msra.mxu0 %v2627
    %2648 = vmatprep.subr.bf16.mxu0 0
    %2649 = vmatpush1.bf16.msra.mxu0 %v2628
    %2650 = vmatprep.subr.bf16.mxu0 0
    %2651 = vmatpush1.bf16.msra.mxu0 %v2629
    %2652 = vmatprep.subr.bf16.mxu0 0
    %2653 = vmatpush1.bf16.msra.mxu0 %v2630
    %2654 = vmatprep.subr.bf16.mxu0 0
    %2655 = vmatpush1.bf16.msra.mxu0 %v2631
    %2656 = vmatprep.subr.bf16.mxu0 0
    %2657 = vmatpush1.bf16.msra.mxu0 0
    %2658 = vmatprep.subr.bf16.mxu0 0
    %2659 = vmatpush1.bf16.msra.mxu0 0
    %2660 = vmatprep.subr.bf16.mxu0 0
    %2661 = vmatpush1.bf16.msra.mxu0 0
    %2662 = vmatprep.subr.bf16.mxu0 0
    %2663 = vmatpush1.bf16.msra.mxu0 0
    %2664 = vmatprep.subr.bf16.mxu0 0
    %2665 = vmatpush1.bf16.msra.mxu0 0
    %2666 = vmatprep.subr.bf16.mxu0 0
    %2667 = vmatpush1.bf16.msra.mxu0 0
    %2668 = vmatprep.subr.bf16.mxu0 0
    %2669 = vmatpush1.bf16.msra.mxu0 0
    %2670 = vmatprep.subr.bf16.mxu0 0
    %2671 = vmatpush1.bf16.msra.mxu0 0
    %2672 = vmatprep.mubr.bf16.mxu0 0
    %2673 = vmatmul.mubr.bf16.gmra.mrb[0].mxu0 %v2570
    %v2674 = vpop.f32.mrb[0].mxu0
    %v2675 = vadd.f32 %v2591, %v2674
    %v2676 = vpop.f32.mrb[0].mxu0
    %v2677 = vpop.f32.mrb[0].mxu0
    %v2678 = vadd.f32 %v2591, %v2677
    %v2679 = vpop.f32.mrb[0].mxu0
    %2680 = vdwg.mxu0
    %v2681 = vmax.f32 %v2675, 0.0
    %v2682 = vmax.f32 %v2678, 0.0
    %v2683 = vpack.c.bf16 %v2682, %v2681
    %v2684 = vld [vmem:[%s3 + $0xe] sm:$0x1]
    %v2685 = vlaneseq
    %v2686 = vshrl.u32 %v2685, 7
    %v2687 = vsub.s32 0, %v2686
    %v2688 = vrot.slane %v2684, %v2687
    %2689 = vmatprep.subr.bf16.mxu0 0
    %2690 = vmatpush1.bf16.msra.mxu0 %v2624
    %2691 = vmatprep.subr.bf16.mxu0 0
    %2692 = vmatpush1.bf16.msra.mxu0 %v2625
    %2693 = vmatprep.subr.bf16.mxu0 0
    %2694 = vmatpush1.bf16.msra.mxu0 %v2626
    %2695 = vmatprep.subr.bf16.mxu0 0
    %2696 = vmatpush1.bf16.msra.mxu0 %v2627
    %2697 = vmatprep.subr.bf16.mxu0 0
    %2698 = vmatpush1.bf16.msra.mxu0 %v2628
    %2699 = vmatprep.subr.bf16.mxu0 0
    %2700 = vmatpush1.bf16.msra.mxu0 %v2629
    %2701 = vmatprep.subr.bf16.mxu0 0
    %2702 = vmatpush1.bf16.msra.mxu0 %v2630
    %2703 = vmatprep.subr.bf16.mxu0 0
    %2704 = vmatpush1.bf16.msra.mxu0 %v2631
    %2705 = vmatprep.subr.bf16.mxu0 0
    %2706 = vmatpush1.bf16.msra.mxu0 0
    %2707 = vmatprep.subr.bf16.mxu0 0
    %2708 = vmatpush1.bf16.msra.mxu0 0
    %2709 = vmatprep.subr.bf16.mxu0 0
    %2710 = vmatpush1.bf16.msra.mxu0 0
    %2711 = vmatprep.subr.bf16.mxu0 0
    %2712 = vmatpush1.bf16.msra.mxu0 0
    %2713 = vmatprep.subr.bf16.mxu0 0
    %2714 = vmatpush1.bf16.msra.mxu0 0
    %2715 = vmatprep.subr.bf16.mxu0 0
    %2716 = vmatpush1.bf16.msra.mxu0 0
    %2717 = vmatprep.subr.bf16.mxu0 0
    %2718 = vmatpush1.bf16.msra.mxu0 0
    %2719 = vmatprep.subr.bf16.mxu0 0
    %2720 = vmatpush1.bf16.msra.mxu0 0
    %2721 = vmatprep.mubr.bf16.mxu0 0
    %2722 = vmatmul.mubr.bf16.gmra.mrb[0].mxu0 %v2683
    %v2723 = vpop.f32.mrb[0].mxu0
    %v2724 = vadd.f32 %v2688, %v2723
    %v2725 = vpop.f32.mrb[0].mxu0
    %v2726 = vpop.f32.mrb[0].mxu0
    %v2727 = vadd.f32 %v2688, %v2726
    %v2728 = vpop.f32.mrb[0].mxu0
    %2729 = vdwg.mxu0
    %2730 = vst [vmem:[%s5] sm:$0xff] %v2724
    %2731 = vst [vmem:[%s5 + $0x8] sm:$0xff] %v2727
    // Predicated region
    $region30: #{multimodal_forward.1} parent=1 // pred_check
      _
    $region31: #{multimodal_forward.1} parent=1 // pred_check_branch
      %2733 = sbr.rel (0) target = $region33
    $region32: #{multimodal_forward.1} parent=1 // pred_region
      _
    $region33: #{multimodal_forward.1} parent=1 // pred_fallthru
      _
    // Predicated region
    $region34: #{multimodal_forward.1} parent=1 // pred_check
      _
    $region35: #{multimodal_forward.1} parent=1 // pred_check_branch
      %2735 = sbr.rel (0) target = $region37
    $region36: #{multimodal_forward.1} parent=1 // pred_region
      _
    $region37: #{multimodal_forward.1} parent=1 // pred_fallthru
      _
    %2736 = vsyncpa [#allocation3], 1
    %2737 = vsyncpa [#allocation5], 1

</llo_original>
